<compile_context>
chip_gen: v5e
topology: v5e:2x2
jax: 0.10.0
libtpu: 0.0.40
codegen_flags: <defaults>
</compile_context>

<pallas_src>
import functools

import jax
import jax.numpy as jnp
from jax.experimental import pallas as pl
from jax.experimental.pallas import tpu as pltpu

BN_EPS = 1e-5
_MISH_CLAMP = 20.0  # for x > 20, tanh(softplus(x)) == 1.0 in f32


def _round_up(n, m):
    return (n + m - 1) // m * m


def _mish(x, *, approx):
    # mish(x) = x * tanh(softplus(x)) = x * u / (u + 2),  u = t*(t+2), t = e^x
    # Clamp before exp so neither branch of the where produces inf/NaN.
    t = jnp.exp(jnp.minimum(x, _MISH_CLAMP))
    u = t * (t + 2.0)
    if approx:
        tanh_sp = u * pl.reciprocal(u + 2.0, approx=True)  # EUP slot, ~free
    else:
        tanh_sp = u / (u + 2.0)                            # exact path
    return jnp.where(x > _MISH_CLAMP, x, x * tanh_sp)


def _batchnorm_train(h, gamma, beta, *, approx):
    # Training-mode BatchNorm1d with mean-centred (biased) variance.  Two
    # passes over the VMEM-resident tile -- elementwise compute is free in
    # this weight-DMA-bound kernel, and it avoids E[x^2]-E[x]^2 cancellation.
    inv_n = 1.0 / h.shape[0]
    mean = jnp.sum(h, axis=0, keepdims=True) * inv_n
    c = h - mean
    var = jnp.sum(c * c, axis=0, keepdims=True) * inv_n
    if approx:
        scale = gamma * jax.lax.rsqrt(var + BN_EPS)
    else:
        scale = gamma / jnp.sqrt(var + BN_EPS)
    return c * scale + beta


def encoder_kernel(
    x_ref,
    w1_ref, g1_ref, be1_ref,
    w2_ref, g2_ref, be2_ref,
    w3_ref, b3_ref,
    out_ref,
    *, approx,
):
    mm_dtype = w1_ref.dtype  # f32 or bf16 matmul inputs; accumulation is f32

    # ---- Linear(data_size -> 1024) [bias cancelled by train-BN] + BN + Mish --
    h = jnp.dot(x_ref[...].astype(mm_dtype), w1_ref[...],
                preferred_element_type=jnp.float32)
    h = _mish(_batchnorm_train(h, g1_ref[...], be1_ref[...], approx=approx),
              approx=approx)

    # ---- Linear(1024 -> 512) [bias cancelled by train-BN] + BN + Mish --------
    h = jnp.dot(h.astype(mm_dtype), w2_ref[...],
                preferred_element_type=jnp.float32)
    h = _mish(_batchnorm_train(h, g2_ref[...], be2_ref[...], approx=approx),
              approx=approx)

    # ---- Linear(512 -> latent_dim_padded) ------------------------------------
    out = jnp.dot(h.astype(mm_dtype), w3_ref[...],
                  preferred_element_type=jnp.float32) + b3_ref[...]
    out_ref[...] = out.astype(out_ref.dtype)


def prepare_params(params, *, weight_dtype=jnp.bfloat16):
    """One-time weight preparation (do NOT call per forward step).

    * drops b1/b2 (exactly cancelled by training-mode BN mean subtraction),
    * zero-pads w3/b3's output dim to a multiple of 128 (lane-dense store),
    * casts matmul weights to `weight_dtype` (bf16 default halves weight DMA).
    Returns (kernel_args_tuple, latent_dim).
    """
    (w1, b1, g1, be1, w2, b2, g2, be2, w3, b3) = params
    del b1, b2  # valid only for training-mode BN; reinstate for eval-mode BN.

    latent_dim = w3.shape[1]
    l_pad = _round_up(latent_dim, 128)
    wd = jnp.dtype(weight_dtype)

    if l_pad != latent_dim:
        w3 = jnp.pad(w3, ((0, 0), (0, l_pad - latent_dim)))
        b3 = jnp.pad(b3, ((0, 0), (0, l_pad - latent_dim)))

    kargs = (w1.astype(wd), g1, be1,
             w2.astype(wd), g2, be2,
             w3.astype(wd), b3)
    return kargs, latent_dim


def _vmem_limit_bytes(batch, data_size, l_pad, weight_itemsize):
    w_bytes = (data_size * 1024 + 1024 * 512 + 512 * l_pad) * weight_itemsize
    act_bytes = batch * (data_size + 1024 + 512 + l_pad) * 4
    need = 4 * (w_bytes + act_bytes) + (2 << 20)  # buffers + temps + slack
    try:
        # Generation-aware ceiling (~85% of physical VMEM: 128 MiB on
        # v5e/v6e, 64 MiB per TC on v7x), leaving Mosaic scratch headroom.
        cap = int(pltpu.get_tpu_info().vmem_capacity_bytes * 0.85)
    except Exception:  # pragma: no cover - conservative fallback
        cap = 48 << 20
    return int(min(max(need, 32 << 20), cap))


@functools.partial(jax.jit,
                   static_argnames=("latent_dim", "approx", "return_padded"))
def encoder_forward(x, kparams, *, latent_dim, approx=True,
                    return_padded=False):
    """Forward pass.  `kparams` must come from `prepare_params` (cached)."""
    (w1, g1, be1, w2, g2, be2, w3, b3) = kparams
    batch, data_size = x.shape
    l_pad = w3.shape[1]

    vmem_limit = _vmem_limit_bytes(batch, data_size, l_pad,
                                   jnp.dtype(w1.dtype).itemsize)

    vmem = pl.BlockSpec(memory_space=pltpu.MemorySpace.VMEM)
    out_p = pl.pallas_call(
        functools.partial(encoder_kernel, approx=approx),
        out_shape=jax.ShapeDtypeStruct((batch, l_pad), jnp.float32),
        in_specs=[vmem] * 9,
        out_specs=vmem,
        compiler_params=pltpu.CompilerParams(vmem_limit_bytes=vmem_limit),
    )(x, w1, g1, be1, w2, g2, be2, w3, b3)

    if return_padded:
        return out_p          # skip the trailing slice copy if caller allows
    return out_p[:, :latent_dim]


def init_params(key, data_size, latent_dim):
    """Deterministic parameter init (PyTorch-Linear-style uniform bounds)."""
    def linear(key, fan_in, fan_out):
        k_w, k_b = jax.random.split(key)
        bound = 1.0 / jnp.sqrt(fan_in)
        # Stored as (in, out): transposed relative to PyTorch's (out, in).
        w = jax.random.uniform(k_w, (fan_in, fan_out), jnp.float32, -bound, bound)
        b = jax.random.uniform(k_b, (1, fan_out), jnp.float32, -bound, bound)
        return w, b

    k1, k2, k3 = jax.random.split(key, 3)
    w1, b1 = linear(k1, data_size, 1024)
    w2, b2 = linear(k2, 1024, 512)
    w3, b3 = linear(k3, 512, latent_dim)

    # BatchNorm affine params at their PyTorch defaults (weight=1, bias=0).
    g1, be1 = jnp.ones((1, 1024), jnp.float32), jnp.zeros((1, 1024), jnp.float32)
    g2, be2 = jnp.ones((1, 512), jnp.float32), jnp.zeros((1, 512), jnp.float32)

    return (w1, b1, g1, be1, w2, b2, g2, be2, w3, b3)


def reference_forward(x, params):
    """Plain-JAX reference with the literal PyTorch-module semantics
    (biases included, two-pass BN, logaddexp-based Mish)."""
    (w1, b1, g1, be1, w2, b2, g2, be2, w3, b3) = params

    def bn(h, g, b):
        m = jnp.mean(h, axis=0, keepdims=True)
        v = jnp.mean((h - m) ** 2, axis=0, keepdims=True)
        return (h - m) / jnp.sqrt(v + BN_EPS) * g + b

    def mish(h):
        return h * jnp.tanh(jnp.logaddexp(0.0, h))

    h = mish(bn(x @ w1 + b1, g1, be1))
    h = mish(bn(h @ w2 + b2, g2, be2))
    return h @ w3 + b3


if __name__ == "__main__":
    # Small, module-consistent shapes: hidden dims (1024, 512) are fixed by
    # the module; data_size and latent_dim are free hyperparameters.
    batch = 8
    data_size = 64
    latent_dim = 32

    key = jax.random.PRNGKey(0)
    k_x, k_p = jax.random.split(key)
    x = jax.random.normal(k_x, (batch, data_size), jnp.float32)
    params = init_params(k_p, data_size, latent_dim)

    ref = reference_forward(x, params)

    # Exact f32 path: f32 weights, true div/sqrt -> must track the reference.
    kp_f32, ld = prepare_params(params, weight_dtype=jnp.float32)
    out = jax.block_until_ready(
        encoder_forward(x, kp_f32, latent_dim=ld, approx=False))
    assert out.shape == (batch, latent_dim)
    err_f32 = float(jnp.max(jnp.abs(out - ref)))
    assert jnp.allclose(out, ref, atol=1e-2, rtol=1e-2), (
        f"f32 path mismatch vs JAX reference (max abs err {err_f32:.3e})")

    # Default fast path: bf16 weights in HBM (prepared once, reused per call),
    # f32 accumulation, approximate EUP reciprocal/rsqrt.
    kp_bf16, ld = prepare_params(params)          # bf16 is the default
    out_fast = jax.block_until_ready(
        encoder_forward(x, kp_bf16, latent_dim=ld))
    assert out_fast.shape == (batch, latent_dim)
    assert bool(jnp.all(jnp.isfinite(out_fast)))
    err_bf16 = float(jnp.max(jnp.abs(out_fast - ref)))
    assert jnp.allclose(out_fast, ref, atol=1e-1, rtol=1e-1), (
        f"bf16 path deviates too far from reference (max abs err {err_bf16:.3e})")

    print("KERNEL_OK")
</pallas_src>

<mosaic_0001>
module attributes {stable_mosaic.version = 11 : i64} {
  func.func @encoder_kernel(%arg0: memref<8x64xf32, #tpu.memory_space<vmem>>, %arg1: memref<64x1024xf32, #tpu.memory_space<vmem>>, %arg2: memref<1x1024xf32, #tpu.memory_space<vmem>>, %arg3: memref<1x1024xf32, #tpu.memory_space<vmem>>, %arg4: memref<1024x512xf32, #tpu.memory_space<vmem>>, %arg5: memref<1x512xf32, #tpu.memory_space<vmem>>, %arg6: memref<1x512xf32, #tpu.memory_space<vmem>>, %arg7: memref<512x128xf32, #tpu.memory_space<vmem>>, %arg8: memref<1x128xf32, #tpu.memory_space<vmem>>, %arg9: memref<8x128xf32, #tpu.memory_space<vmem>>) attributes {dimension_semantics = [], scalar_prefetch = 0 : i64, scratch_operands = 0 : i64, tpu.core_type = #tpu.core_type<tc>} {
    %c0 = arith.constant 0 : index
    %c0_0 = arith.constant 0 : index
    %0 = vector.load %arg0[%c0, %c0_0] : memref<8x64xf32, #tpu.memory_space<vmem>>, vector<8x64xf32>
    %c0_1 = arith.constant 0 : index
    %c0_2 = arith.constant 0 : index
    %1 = vector.load %arg1[%c0_1, %c0_2] : memref<64x1024xf32, #tpu.memory_space<vmem>>, vector<64x1024xf32>
    %cst = arith.constant dense<0.000000e+00> : vector<8x1024xf32>
    %2 = tpu.matmul %0, %1, %cst {dimension_numbers = #tpu.dot_dimension_numbers<[1], [0], [0], [1], [0, 0, 1, 1], [], []>} : vector<8x64xf32>, vector<64x1024xf32>, vector<8x1024xf32> -> vector<8x1024xf32>
    %c0_3 = arith.constant 0 : index
    %c0_4 = arith.constant 0 : index
    %3 = vector.load %arg2[%c0_3, %c0_4] : memref<1x1024xf32, #tpu.memory_space<vmem>>, vector<1x1024xf32>
    %c0_5 = arith.constant 0 : index
    %c0_6 = arith.constant 0 : index
    %4 = vector.load %arg3[%c0_5, %c0_6] : memref<1x1024xf32, #tpu.memory_space<vmem>>, vector<1x1024xf32>
    %cst_7 = arith.constant dense<0.000000e+00> : vector<1024xf32>
    %5 = vector.multi_reduction <add>, %2, %cst_7 [0] : vector<8x1024xf32> to vector<1024xf32>
    %6 = vector.shape_cast %5 : vector<1024xf32> to vector<1x1024xf32>
    %cst_8 = arith.constant 1.250000e-01 : f32
    %7 = vector.broadcast %cst_8 : f32 to vector<1x1024xf32>
    %8 = arith.mulf %6, %7 : vector<1x1024xf32>
    %9 = vector.broadcast %8 : vector<1x1024xf32> to vector<8x1024xf32>
    %10 = arith.subf %2, %9 : vector<8x1024xf32>
    %11 = arith.mulf %10, %10 : vector<8x1024xf32>
    %cst_9 = arith.constant dense<0.000000e+00> : vector<1024xf32>
    %12 = vector.multi_reduction <add>, %11, %cst_9 [0] : vector<8x1024xf32> to vector<1024xf32>
    %13 = vector.shape_cast %12 : vector<1024xf32> to vector<1x1024xf32>
    %cst_10 = arith.constant 1.250000e-01 : f32
    %14 = vector.broadcast %cst_10 : f32 to vector<1x1024xf32>
    %15 = arith.mulf %13, %14 : vector<1x1024xf32>
    %cst_11 = arith.constant 9.99999974E-6 : f32
    %16 = vector.broadcast %cst_11 : f32 to vector<1x1024xf32>
    %17 = arith.addf %15, %16 : vector<1x1024xf32>
    %18 = math.sqrt %17 : vector<1x1024xf32>
    %19 = arith.divf %3, %18 : vector<1x1024xf32>
    %20 = vector.broadcast %19 : vector<1x1024xf32> to vector<8x1024xf32>
    %21 = arith.mulf %10, %20 : vector<8x1024xf32>
    %22 = vector.broadcast %4 : vector<1x1024xf32> to vector<8x1024xf32>
    %23 = arith.addf %21, %22 : vector<8x1024xf32>
    %cst_12 = arith.constant 2.000000e+01 : f32
    %24 = vector.broadcast %cst_12 : f32 to vector<8x1024xf32>
    %25 = arith.minimumf %23, %24 : vector<8x1024xf32>
    %26 = math.exp %25 : vector<8x1024xf32>
    %cst_13 = arith.constant 2.000000e+00 : f32
    %27 = vector.broadcast %cst_13 : f32 to vector<8x1024xf32>
    %28 = arith.addf %26, %27 : vector<8x1024xf32>
    %29 = arith.mulf %26, %28 : vector<8x1024xf32>
    %cst_14 = arith.constant 2.000000e+00 : f32
    %30 = vector.broadcast %cst_14 : f32 to vector<8x1024xf32>
    %31 = arith.addf %29, %30 : vector<8x1024xf32>
    %32 = arith.divf %29, %31 : vector<8x1024xf32>
    %cst_15 = arith.constant 2.000000e+01 : f32
    %33 = vector.broadcast %cst_15 : f32 to vector<8x1024xf32>
    %34 = arith.cmpf ogt, %23, %33 : vector<8x1024xf32>
    %35 = arith.mulf %23, %32 : vector<8x1024xf32>
    %36 = arith.select %34, %23, %35 : vector<8x1024xi1>, vector<8x1024xf32>
    %c0_16 = arith.constant 0 : index
    %c0_17 = arith.constant 0 : index
    %37 = vector.load %arg4[%c0_16, %c0_17] : memref<1024x512xf32, #tpu.memory_space<vmem>>, vector<1024x512xf32>
    %cst_18 = arith.constant dense<0.000000e+00> : vector<8x512xf32>
    %38 = tpu.matmul %36, %37, %cst_18 {dimension_numbers = #tpu.dot_dimension_numbers<[1], [0], [0], [1], [0, 0, 1, 1], [], []>} : vector<8x1024xf32>, vector<1024x512xf32>, vector<8x512xf32> -> vector<8x512xf32>
    %c0_19 = arith.constant 0 : index
    %c0_20 = arith.constant 0 : index
    %39 = vector.load %arg5[%c0_19, %c0_20] : memref<1x512xf32, #tpu.memory_space<vmem>>, vector<1x512xf32>
    %c0_21 = arith.constant 0 : index
    %c0_22 = arith.constant 0 : index
    %40 = vector.load %arg6[%c0_21, %c0_22] : memref<1x512xf32, #tpu.memory_space<vmem>>, vector<1x512xf32>
    %cst_23 = arith.constant dense<0.000000e+00> : vector<512xf32>
    %41 = vector.multi_reduction <add>, %38, %cst_23 [0] : vector<8x512xf32> to vector<512xf32>
    %42 = vector.shape_cast %41 : vector<512xf32> to vector<1x512xf32>
    %cst_24 = arith.constant 1.250000e-01 : f32
    %43 = vector.broadcast %cst_24 : f32 to vector<1x512xf32>
    %44 = arith.mulf %42, %43 : vector<1x512xf32>
    %45 = vector.broadcast %44 : vector<1x512xf32> to vector<8x512xf32>
    %46 = arith.subf %38, %45 : vector<8x512xf32>
    %47 = arith.mulf %46, %46 : vector<8x512xf32>
    %cst_25 = arith.constant dense<0.000000e+00> : vector<512xf32>
    %48 = vector.multi_reduction <add>, %47, %cst_25 [0] : vector<8x512xf32> to vector<512xf32>
    %49 = vector.shape_cast %48 : vector<512xf32> to vector<1x512xf32>
    %cst_26 = arith.constant 1.250000e-01 : f32
    %50 = vector.broadcast %cst_26 : f32 to vector<1x512xf32>
    %51 = arith.mulf %49, %50 : vector<1x512xf32>
    %cst_27 = arith.constant 9.99999974E-6 : f32
    %52 = vector.broadcast %cst_27 : f32 to vector<1x512xf32>
    %53 = arith.addf %51, %52 : vector<1x512xf32>
    %54 = math.sqrt %53 : vector<1x512xf32>
    %55 = arith.divf %39, %54 : vector<1x512xf32>
    %56 = vector.broadcast %55 : vector<1x512xf32> to vector<8x512xf32>
    %57 = arith.mulf %46, %56 : vector<8x512xf32>
    %58 = vector.broadcast %40 : vector<1x512xf32> to vector<8x512xf32>
    %59 = arith.addf %57, %58 : vector<8x512xf32>
    %cst_28 = arith.constant 2.000000e+01 : f32
    %60 = vector.broadcast %cst_28 : f32 to vector<8x512xf32>
    %61 = arith.minimumf %59, %60 : vector<8x512xf32>
    %62 = math.exp %61 : vector<8x512xf32>
    %cst_29 = arith.constant 2.000000e+00 : f32
    %63 = vector.broadcast %cst_29 : f32 to vector<8x512xf32>
    %64 = arith.addf %62, %63 : vector<8x512xf32>
    %65 = arith.mulf %62, %64 : vector<8x512xf32>
    %cst_30 = arith.constant 2.000000e+00 : f32
    %66 = vector.broadcast %cst_30 : f32 to vector<8x512xf32>
    %67 = arith.addf %65, %66 : vector<8x512xf32>
    %68 = arith.divf %65, %67 : vector<8x512xf32>
    %cst_31 = arith.constant 2.000000e+01 : f32
    %69 = vector.broadcast %cst_31 : f32 to vector<8x512xf32>
    %70 = arith.cmpf ogt, %59, %69 : vector<8x512xf32>
    %71 = arith.mulf %59, %68 : vector<8x512xf32>
    %72 = arith.select %70, %59, %71 : vector<8x512xi1>, vector<8x512xf32>
    %c0_32 = arith.constant 0 : index
    %c0_33 = arith.constant 0 : index
    %73 = vector.load %arg7[%c0_32, %c0_33] : memref<512x128xf32, #tpu.memory_space<vmem>>, vector<512x128xf32>
    %cst_34 = arith.constant dense<0.000000e+00> : vector<8x128xf32>
    %74 = tpu.matmul %72, %73, %cst_34 {dimension_numbers = #tpu.dot_dimension_numbers<[1], [0], [0], [1], [0, 0, 1, 1], [], []>} : vector<8x512xf32>, vector<512x128xf32>, vector<8x128xf32> -> vector<8x128xf32>
    %c0_35 = arith.constant 0 : index
    %c0_36 = arith.constant 0 : index
    %75 = vector.load %arg8[%c0_35, %c0_36] : memref<1x128xf32, #tpu.memory_space<vmem>>, vector<1x128xf32>
    %76 = vector.broadcast %75 : vector<1x128xf32> to vector<8x128xf32>
    %77 = arith.addf %74, %76 : vector<8x128xf32>
    %c0_37 = arith.constant 0 : index
    %c0_38 = arith.constant 0 : index
    %78 = vector.load %arg9[%c0_37, %c0_38] : memref<8x128xf32, #tpu.memory_space<vmem>>, vector<8x128xf32>
    tpu.vector_store %arg9[%c0_37, %c0_38], %77 {strides = array<i32>} : memref<8x128xf32, #tpu.memory_space<vmem>>, vector<8x128xf32>,
    return
  }
}

</mosaic_0001>

<llo_original>
// kernel: encoder_forward.1
$region0: #{encoder_forward.1}
  #allocation0 [shape = 'u32[]', space=smem, size = 0x4, offset = 0x4, fixed_abs, tag = 'smem constant byte address 0x4 - core index']
  #allocation1 [shape = 'u32[72,128]{1,0:T(1,128)}', space=vmem, size = 0x9000, scoped, tag = 'internal scratch']
  %s0 = inlined_call_operand.hbm [shape: f32[8,64], index: 0, kind: input, shape index: {}]
  %s1 = inlined_call_operand.hbm [shape: f32[64,1024], index: 1, kind: input, shape index: {}]
  %s2 = inlined_call_operand.hbm [shape: f32[1,1024], index: 2, kind: input, shape index: {}]
  %s3 = inlined_call_operand.hbm [shape: f32[1,1024], index: 3, kind: input, shape index: {}]
  %s4 = inlined_call_operand.hbm [shape: f32[1024,512], index: 4, kind: input, shape index: {}]
  %s5 = inlined_call_operand.hbm [shape: f32[1,512], index: 5, kind: input, shape index: {}]
  %s6 = inlined_call_operand.hbm [shape: f32[1,512], index: 6, kind: input, shape index: {}]
  %s7 = inlined_call_operand.hbm [shape: f32[512,128], index: 7, kind: input, shape index: {}]
  %s8 = inlined_call_operand.hbm [shape: f32[1,128], index: 8, kind: input, shape index: {}]
  %s9 = inlined_call_operand.hbm [shape: f32[8,128], index: 9, kind: output, shape index: {}]
  %s10 = sld [smem:[#allocation0]]
  $region82: #{encoder_forward.1} parent=0
    _
  %s12 = ssub.s32 1, %s10
  %s13 = scalar_select 0, %s12, %s10
  $region1: #{encoder_forward.1} parent=0
    #allocation2 [shape = 'u8[4096]{0}', space=vmem, size = 0x1000, scoped, tag = 'input window, operand 0, single buffered']
    #allocation3 [shape = 's32[1]{0}', space=sflag, size = 0x4, scoped, tag = 'scoped memory for encoder_forward.1']
    #allocation4 [shape = 's32[1]{0}', space=sflag, size = 0x4, scoped, tag = 'scoped memory for encoder_forward.1']
    #allocation5 [shape = 'u8[262144]{0}', space=vmem, size = 0x40000, scoped, tag = 'input window, operand 1, single buffered']
    #allocation6 [shape = 's32[1]{0}', space=sflag, size = 0x4, scoped, tag = 'scoped memory for encoder_forward.1']
    #allocation7 [shape = 'u8[4096]{0}', space=vmem, size = 0x1000, scoped, tag = 'input window, operand 2, single buffered']
    #allocation8 [shape = 'u8[4096]{0}', space=vmem, size = 0x1000, scoped, tag = 'input window, operand 3, single buffered']
    #allocation9 [shape = 's32[1]{0}', space=sflag, size = 0x4, scoped, tag = 'scoped memory for encoder_forward.1']
    #allocation10 [shape = 'u8[2097152]{0}', space=vmem, size = 0x200000, scoped, tag = 'input window, operand 4, single buffered']
    #allocation11 [shape = 'u8[2048]{0}', space=vmem, size = 0x800, scoped, tag = 'input window, operand 5, single buffered']
    #allocation12 [shape = 's32[1]{0}', space=sflag, size = 0x4, scoped, tag = 'scoped memory for encoder_forward.1']
    #allocation13 [shape = 'u8[2048]{0}', space=vmem, size = 0x800, scoped, tag = 'input window, operand 6, single buffered']
    #allocation14 [shape = 'u8[262144]{0}', space=vmem, size = 0x40000, scoped, tag = 'input window, operand 7, single buffered']
    #allocation15 [shape = 's32[1]{0}', space=sflag, size = 0x4, scoped, tag = 'scoped memory for encoder_forward.1']
    #allocation16 [shape = 'u8[512]{0}', space=vmem, size = 0x400, scoped, tag = 'input window, operand 8, single buffered']
    #allocation17 [shape = 'u8[4096]{0}', space=vmem, size = 0x1000, scoped, tag = 'output window, operand 0, single buffered']
    %14 = vsyncpa [#allocation3], 0
    %15 = vsyncpa [#allocation6], 0
    %16 = vsyncpa [#allocation9], 0
    %17 = vsyncpa [#allocation12], 0
    %18 = vsyncpa [#allocation15], 0
    %19 = vsyncpa [#allocation4], 0
    // Predicated region
    $region2: #{encoder_forward.1} parent=1 // pred_check
      _
    $region3: #{encoder_forward.1} parent=1 // pred_check_branch
      %21 = sbr.rel (0) target = $region5
    $region4: #{encoder_forward.1} parent=1 // pred_region
      %23 = vsyncadd [#allocation3], 0
      %s25 = sshll.u32 %s0, 4
      %s26 = int_to_ptr.hbm [resolvable:$true] %s25
      %s27 = sshll.u32 [#allocation2], 4
      %s28 = int_to_ptr.vmem [resolvable:$true] %s27
      %30 = dma.hbm_to_vmem [thread:$0]  %s26, 128, %s28, [#allocation3]
    $region5: #{encoder_forward.1} parent=1 // pred_fallthru
      _
    // Predicated region
    $region6: #{encoder_forward.1} parent=1 // pred_check
      _
    $region7: #{encoder_forward.1} parent=1 // pred_check_branch
      %32 = sbr.rel (0) target = $region9
    $region8: #{encoder_forward.1} parent=1 // pred_region
      %34 = vsyncadd [#allocation6], 0
      %s35 = sshll.u32 %s1, 4
      %s36 = int_to_ptr.hbm [resolvable:$true] %s35
      %s37 = sshll.u32 [#allocation5], 4
      %s38 = int_to_ptr.vmem [resolvable:$true] %s37
      %43 = dma.hbm_to_vmem [thread:$0]  %s36, 8192, %s38, [#allocation6], 1024, 1024, 64
    $region9: #{encoder_forward.1} parent=1 // pred_fallthru
      _
    // Predicated region
    $region10: #{encoder_forward.1} parent=1 // pred_check
      _
    $region11: #{encoder_forward.1} parent=1 // pred_check_branch
      %45 = sbr.rel (0) target = $region13
    $region12: #{encoder_forward.1} parent=1 // pred_region
      %47 = vsyncadd [#allocation6], 0
      %s49 = sshll.u32 %s2, 4
      %s50 = int_to_ptr.hbm [resolvable:$true] %s49
      %s51 = sshll.u32 [#allocation7], 4
      %s52 = int_to_ptr.vmem [resolvable:$true] %s51
      %54 = dma.hbm_to_vmem [thread:$0]  %s50, 128, %s52, [#allocation6]
    $region13: #{encoder_forward.1} parent=1 // pred_fallthru
      _
    // Predicated region
    $region14: #{encoder_forward.1} parent=1 // pred_check
      _
    $region15: #{encoder_forward.1} parent=1 // pred_check_branch
      %56 = sbr.rel (0) target = $region17
    $region16: #{encoder_forward.1} parent=1 // pred_region
      %58 = vsyncadd [#allocation9], 0
      %s60 = sshll.u32 %s3, 4
      %s61 = int_to_ptr.hbm [resolvable:$true] %s60
      %s62 = sshll.u32 [#allocation8], 4
      %s63 = int_to_ptr.vmem [resolvable:$true] %s62
      %65 = dma.hbm_to_vmem [thread:$0]  %s61, 128, %s63, [#allocation9]
    $region17: #{encoder_forward.1} parent=1 // pred_fallthru
      _
    // Predicated region
    $region18: #{encoder_forward.1} parent=1 // pred_check
      _
    $region19: #{encoder_forward.1} parent=1 // pred_check_branch
      %67 = sbr.rel (0) target = $region21
    $region20: #{encoder_forward.1} parent=1 // pred_region
      %69 = vsyncadd [#allocation9], 0
      %s70 = sshll.u32 %s4, 4
      %s71 = int_to_ptr.hbm [resolvable:$true] %s70
      %s72 = sshll.u32 [#allocation10], 4
      %s73 = int_to_ptr.vmem [resolvable:$true] %s72
      %78 = dma.hbm_to_vmem [thread:$0]  %s71, 65536, %s73, [#allocation9], 512, 512, 32
    $region21: #{encoder_forward.1} parent=1 // pred_fallthru
      _
    // Predicated region
    $region22: #{encoder_forward.1} parent=1 // pred_check
      _
    $region23: #{encoder_forward.1} parent=1 // pred_check_branch
      %80 = sbr.rel (0) target = $region25
    $region24: #{encoder_forward.1} parent=1 // pred_region
      %82 = vsyncadd [#allocation12], 0
      %s84 = sshll.u32 %s5, 4
      %s85 = int_to_ptr.hbm [resolvable:$true] %s84
      %s86 = sshll.u32 [#allocation11], 4
      %s87 = int_to_ptr.vmem [resolvable:$true] %s86
      %89 = dma.hbm_to_vmem [thread:$0]  %s85, 64, %s87, [#allocation12]
    $region25: #{encoder_forward.1} parent=1 // pred_fallthru
      _
    // Predicated region
    $region26: #{encoder_forward.1} parent=1 // pred_check
      _
    $region27: #{encoder_forward.1} parent=1 // pred_check_branch
      %91 = sbr.rel (0) target = $region29
    $region28: #{encoder_forward.1} parent=1 // pred_region
      %93 = vsyncadd [#allocation12], 0
      %s95 = sshll.u32 %s6, 4
      %s96 = int_to_ptr.hbm [resolvable:$true] %s95
      %s97 = sshll.u32 [#allocation13], 4
      %s98 = int_to_ptr.vmem [resolvable:$true] %s97
      %100 = dma.hbm_to_vmem [thread:$0]  %s96, 64, %s98, [#allocation12]
    $region29: #{encoder_forward.1} parent=1 // pred_fallthru
      _
    // Predicated region
    $region30: #{encoder_forward.1} parent=1 // pred_check
      _
    $region31: #{encoder_forward.1} parent=1 // pred_check_branch
      %102 = sbr.rel (0) target = $region33
    $region32: #{encoder_forward.1} parent=1 // pred_region
      %104 = vsyncadd [#allocation15], 0
      %s105 = sshll.u32 %s7, 4
      %s106 = int_to_ptr.hbm [resolvable:$true] %s105
      %s107 = sshll.u32 [#allocation14], 4
      %s108 = int_to_ptr.vmem [resolvable:$true] %s107
      %113 = dma.hbm_to_vmem [thread:$0]  %s106, 8192, %s108, [#allocation15], 128, 128, 8
    $region33: #{encoder_forward.1} parent=1 // pred_fallthru
      _
    // Predicated region
    $region34: #{encoder_forward.1} parent=1 // pred_check
      _
    $region35: #{encoder_forward.1} parent=1 // pred_check_branch
      %115 = sbr.rel (0) target = $region37
    $region36: #{encoder_forward.1} parent=1 // pred_region
      %117 = vsyncadd [#allocation15], 0
      %s119 = sshll.u32 %s8, 4
      %s120 = int_to_ptr.hbm [resolvable:$true] %s119
      %s121 = sshll.u32 [#allocation16], 4
      %s122 = int_to_ptr.vmem [resolvable:$true] %s121
      %124 = dma.hbm_to_vmem [thread:$0]  %s120, 16, %s122, [#allocation15]
    $region37: #{encoder_forward.1} parent=1 // pred_fallthru
      _
    // Predicated region
    $region38: #{encoder_forward.1} parent=1 // pred_check
      _
    $region39: #{encoder_forward.1} parent=1 // pred_check_branch
      %126 = sbr.rel (0) target = $region41
    $region40: #{encoder_forward.1} parent=1 // pred_region
      %128 = dma.done [#allocation3], 128
    $region41: #{encoder_forward.1} parent=1 // pred_fallthru
      _
    // Predicated region
    $region42: #{encoder_forward.1} parent=1 // pred_check
      _
    $region43: #{encoder_forward.1} parent=1 // pred_check_branch
      %130 = sbr.rel (0) target = $region45
    $region44: #{encoder_forward.1} parent=1 // pred_region
      %132 = dma.done [#allocation6], 8192
    $region45: #{encoder_forward.1} parent=1 // pred_fallthru
      _
    // Predicated region
    $region46: #{encoder_forward.1} parent=1 // pred_check
      _
    $region47: #{encoder_forward.1} parent=1 // pred_check_branch
      %134 = sbr.rel (0) target = $region49
    $region48: #{encoder_forward.1} parent=1 // pred_region
      %136 = dma.done [#allocation6], 128
    $region49: #{encoder_forward.1} parent=1 // pred_fallthru
      _
    // Predicated region
    $region50: #{encoder_forward.1} parent=1 // pred_check
      _
    $region51: #{encoder_forward.1} parent=1 // pred_check_branch
      %138 = sbr.rel (0) target = $region53
    $region52: #{encoder_forward.1} parent=1 // pred_region
      %140 = dma.done [#allocation9], 128
    $region53: #{encoder_forward.1} parent=1 // pred_fallthru
      _
    // Predicated region
    $region54: #{encoder_forward.1} parent=1 // pred_check
      _
    $region55: #{encoder_forward.1} parent=1 // pred_check_branch
      %142 = sbr.rel (0) target = $region57
    $region56: #{encoder_forward.1} parent=1 // pred_region
      %144 = dma.done [#allocation9], 65536
    $region57: #{encoder_forward.1} parent=1 // pred_fallthru
      _
    // Predicated region
    $region58: #{encoder_forward.1} parent=1 // pred_check
      _
    $region59: #{encoder_forward.1} parent=1 // pred_check_branch
      %146 = sbr.rel (0) target = $region61
    $region60: #{encoder_forward.1} parent=1 // pred_region
      %148 = dma.done [#allocation12], 64
    $region61: #{encoder_forward.1} parent=1 // pred_fallthru
      _
    // Predicated region
    $region62: #{encoder_forward.1} parent=1 // pred_check
      _
    $region63: #{encoder_forward.1} parent=1 // pred_check_branch
      %150 = sbr.rel (0) target = $region65
    $region64: #{encoder_forward.1} parent=1 // pred_region
      %152 = dma.done [#allocation12], 64
    $region65: #{encoder_forward.1} parent=1 // pred_fallthru
      _
    // Predicated region
    $region66: #{encoder_forward.1} parent=1 // pred_check
      _
    $region67: #{encoder_forward.1} parent=1 // pred_check_branch
      %154 = sbr.rel (0) target = $region69
    $region68: #{encoder_forward.1} parent=1 // pred_region
      %156 = dma.done [#allocation15], 8192
    $region69: #{encoder_forward.1} parent=1 // pred_fallthru
      _
    // Predicated region
    $region70: #{encoder_forward.1} parent=1 // pred_check
      _
    $region71: #{encoder_forward.1} parent=1 // pred_check_branch
      %158 = sbr.rel (0) target = $region73
    $region72: #{encoder_forward.1} parent=1 // pred_region
      %160 = dma.done [#allocation15], 16
    $region73: #{encoder_forward.1} parent=1 // pred_fallthru
      _
    %v161 = vld [vmem:[#allocation2] sm:$0xff]
    %v162 = vld [vmem:[#allocation5] sm:$0xff]
    %v163 = vld [vmem:[#allocation5 + $0x8] sm:$0xff]
    %v164 = vld [vmem:[#allocation5 + $0x10] sm:$0xff]
    %v165 = vld [vmem:[#allocation5 + $0x18] sm:$0xff]
    %v166 = vld [vmem:[#allocation5 + $0x20] sm:$0xff]
    %v167 = vld [vmem:[#allocation5 + $0x28] sm:$0xff]
    %v168 = vld [vmem:[#allocation5 + $0x30] sm:$0xff]
    %v169 = vld [vmem:[#allocation5 + $0x38] sm:$0xff]
    %v170 = vld [vmem:[#allocation5 + $0x40] sm:$0xff]
    %v171 = vld [vmem:[#allocation5 + $0x48] sm:$0xff]
    %v172 = vld [vmem:[#allocation5 + $0x50] sm:$0xff]
    %v173 = vld [vmem:[#allocation5 + $0x58] sm:$0xff]
    %v174 = vld [vmem:[#allocation5 + $0x60] sm:$0xff]
    %v175 = vld [vmem:[#allocation5 + $0x68] sm:$0xff]
    %v176 = vld [vmem:[#allocation5 + $0x70] sm:$0xff]
    %v177 = vld [vmem:[#allocation5 + $0x78] sm:$0xff]
    %v178 = vld [vmem:[#allocation5 + $0x80] sm:$0xff]
    %v179 = vld [vmem:[#allocation5 + $0x88] sm:$0xff]
    %v180 = vld [vmem:[#allocation5 + $0x90] sm:$0xff]
    %v181 = vld [vmem:[#allocation5 + $0x98] sm:$0xff]
    %v182 = vld [vmem:[#allocation5 + $0xa0] sm:$0xff]
    %v183 = vld [vmem:[#allocation5 + $0xa8] sm:$0xff]
    %v184 = vld [vmem:[#allocation5 + $0xb0] sm:$0xff]
    %v185 = vld [vmem:[#allocation5 + $0xb8] sm:$0xff]
    %v186 = vld [vmem:[#allocation5 + $0xc0] sm:$0xff]
    %v187 = vld [vmem:[#allocation5 + $0xc8] sm:$0xff]
    %v188 = vld [vmem:[#allocation5 + $0xd0] sm:$0xff]
    %v189 = vld [vmem:[#allocation5 + $0xd8] sm:$0xff]
    %v190 = vld [vmem:[#allocation5 + $0xe0] sm:$0xff]
    %v191 = vld [vmem:[#allocation5 + $0xe8] sm:$0xff]
    %v192 = vld [vmem:[#allocation5 + $0xf0] sm:$0xff]
    %v193 = vld [vmem:[#allocation5 + $0xf8] sm:$0xff]
    %v194 = vld [vmem:[#allocation5 + $0x100] sm:$0xff]
    %v195 = vld [vmem:[#allocation5 + $0x108] sm:$0xff]
    %v196 = vld [vmem:[#allocation5 + $0x110] sm:$0xff]
    %v197 = vld [vmem:[#allocation5 + $0x118] sm:$0xff]
    %v198 = vld [vmem:[#allocation5 + $0x120] sm:$0xff]
    %v199 = vld [vmem:[#allocation5 + $0x128] sm:$0xff]
    %v200 = vld [vmem:[#allocation5 + $0x130] sm:$0xff]
    %v201 = vld [vmem:[#allocation5 + $0x138] sm:$0xff]
    %v202 = vld [vmem:[#allocation5 + $0x140] sm:$0xff]
    %v203 = vld [vmem:[#allocation5 + $0x148] sm:$0xff]
    %v204 = vld [vmem:[#allocation5 + $0x150] sm:$0xff]
    %v205 = vld [vmem:[#allocation5 + $0x158] sm:$0xff]
    %v206 = vld [vmem:[#allocation5 + $0x160] sm:$0xff]
    %v207 = vld [vmem:[#allocation5 + $0x168] sm:$0xff]
    %v208 = vld [vmem:[#allocation5 + $0x170] sm:$0xff]
    %v209 = vld [vmem:[#allocation5 + $0x178] sm:$0xff]
    %v210 = vld [vmem:[#allocation5 + $0x180] sm:$0xff]
    %v211 = vld [vmem:[#allocation5 + $0x188] sm:$0xff]
    %v212 = vld [vmem:[#allocation5 + $0x190] sm:$0xff]
    %v213 = vld [vmem:[#allocation5 + $0x198] sm:$0xff]
    %v214 = vld [vmem:[#allocation5 + $0x1a0] sm:$0xff]
    %v215 = vld [vmem:[#allocation5 + $0x1a8] sm:$0xff]
    %v216 = vld [vmem:[#allocation5 + $0x1b0] sm:$0xff]
    %v217 = vld [vmem:[#allocation5 + $0x1b8] sm:$0xff]
    %v218 = vld [vmem:[#allocation5 + $0x1c0] sm:$0xff]
    %v219 = vld [vmem:[#allocation5 + $0x1c8] sm:$0xff]
    %v220 = vld [vmem:[#allocation5 + $0x1d0] sm:$0xff]
    %v221 = vld [vmem:[#allocation5 + $0x1d8] sm:$0xff]
    %v222 = vld [vmem:[#allocation5 + $0x1e0] sm:$0xff]
    %v223 = vld [vmem:[#allocation5 + $0x1e8] sm:$0xff]
    %v224 = vld [vmem:[#allocation5 + $0x1f0] sm:$0xff]
    %v225 = vld [vmem:[#allocation5 + $0x1f8] sm:$0xff]
    %vm226 = vcmask 523264
    %v228 = vsel %vm226, %v161, 0
    %230 = vmatpush.msra.mxu0 0.0
    %231 = vmatpush.msra.mxu0 0.0
    %232 = vmatpush.msra.mxu0 0.0
    %233 = vmatpush.msra.mxu0 0.0
    %234 = vmatpush.msra.mxu0 0.0
    %235 = vmatpush.msra.mxu0 0.0
    %236 = vmatpush.msra.mxu0 0.0
    %237 = vmatpush.msra.mxu0 0.0
    %238 = vmatpush.msra.mxu0 %v218
    %239 = vmatpush.msra.mxu0 %v210
    %240 = vmatpush.msra.mxu0 %v202
    %241 = vmatpush.msra.mxu0 %v194
    %242 = vmatpush.msra.mxu0 %v186
    %243 = vmatpush.msra.mxu0 %v178
    %244 = vmatpush.msra.mxu0 %v170
    %245 = vmatpush.msra.mxu0 %v162
    %246 = vmatmul.f32.gmra.mxu0 %v228
    %v247 = vpop.f32.mrf.mxu0
    %v248 = vadd.f32 0.0, %v247
    %249 = vdwg.mxu0
    %250 = vmatpush.msra.mxu0 0.0
    %251 = vmatpush.msra.mxu0 0.0
    %252 = vmatpush.msra.mxu0 0.0
    %253 = vmatpush.msra.mxu0 0.0
    %254 = vmatpush.msra.mxu0 0.0
    %255 = vmatpush.msra.mxu0 0.0
    %256 = vmatpush.msra.mxu0 0.0
    %257 = vmatpush.msra.mxu0 0.0
    %258 = vmatpush.msra.mxu0 %v219
    %259 = vmatpush.msra.mxu0 %v211
    %260 = vmatpush.msra.mxu0 %v203
    %261 = vmatpush.msra.mxu0 %v195
    %262 = vmatpush.msra.mxu0 %v187
    %263 = vmatpush.msra.mxu0 %v179
    %264 = vmatpush.msra.mxu0 %v171
    %265 = vmatpush.msra.mxu0 %v163
    %266 = vmatmul.f32.gmra.mxu0 %v228
    %v267 = vpop.f32.mrf.mxu0
    %v268 = vadd.f32 0.0, %v267
    %269 = vdwg.mxu0
    %270 = vmatpush.msra.mxu0 0.0
    %271 = vmatpush.msra.mxu0 0.0
    %272 = vmatpush.msra.mxu0 0.0
    %273 = vmatpush.msra.mxu0 0.0
    %274 = vmatpush.msra.mxu0 0.0
    %275 = vmatpush.msra.mxu0 0.0
    %276 = vmatpush.msra.mxu0 0.0
    %277 = vmatpush.msra.mxu0 0.0
    %278 = vmatpush.msra.mxu0 %v220
    %279 = vmatpush.msra.mxu0 %v212
    %280 = vmatpush.msra.mxu0 %v204
    %281 = vmatpush.msra.mxu0 %v196
    %282 = vmatpush.msra.mxu0 %v188
    %283 = vmatpush.msra.mxu0 %v180
    %284 = vmatpush.msra.mxu0 %v172
    %285 = vmatpush.msra.mxu0 %v164
    %286 = vmatmul.f32.gmra.mxu0 %v228
    %v287 = vpop.f32.mrf.mxu0
    %v288 = vadd.f32 0.0, %v287
    %289 = vdwg.mxu0
    %290 = vmatpush.msra.mxu0 0.0
    %291 = vmatpush.msra.mxu0 0.0
    %292 = vmatpush.msra.mxu0 0.0
    %293 = vmatpush.msra.mxu0 0.0
    %294 = vmatpush.msra.mxu0 0.0
    %295 = vmatpush.msra.mxu0 0.0
    %296 = vmatpush.msra.mxu0 0.0
    %297 = vmatpush.msra.mxu0 0.0
    %298 = vmatpush.msra.mxu0 %v221
    %299 = vmatpush.msra.mxu0 %v213
    %300 = vmatpush.msra.mxu0 %v205
    %301 = vmatpush.msra.mxu0 %v197
    %302 = vmatpush.msra.mxu0 %v189
    %303 = vmatpush.msra.mxu0 %v181
    %304 = vmatpush.msra.mxu0 %v173
    %305 = vmatpush.msra.mxu0 %v165
    %306 = vmatmul.f32.gmra.mxu0 %v228
    %v307 = vpop.f32.mrf.mxu0
    %v308 = vadd.f32 0.0, %v307
    %309 = vdwg.mxu0
    %310 = vmatpush.msra.mxu0 0.0
    %311 = vmatpush.msra.mxu0 0.0
    %312 = vmatpush.msra.mxu0 0.0
    %313 = vmatpush.msra.mxu0 0.0
    %314 = vmatpush.msra.mxu0 0.0
    %315 = vmatpush.msra.mxu0 0.0
    %316 = vmatpush.msra.mxu0 0.0
    %317 = vmatpush.msra.mxu0 0.0
    %318 = vmatpush.msra.mxu0 %v222
    %319 = vmatpush.msra.mxu0 %v214
    %320 = vmatpush.msra.mxu0 %v206
    %321 = vmatpush.msra.mxu0 %v198
    %322 = vmatpush.msra.mxu0 %v190
    %323 = vmatpush.msra.mxu0 %v182
    %324 = vmatpush.msra.mxu0 %v174
    %325 = vmatpush.msra.mxu0 %v166
    %326 = vmatmul.f32.gmra.mxu0 %v228
    %v327 = vpop.f32.mrf.mxu0
    %v328 = vadd.f32 0.0, %v327
    %329 = vdwg.mxu0
    %330 = vmatpush.msra.mxu0 0.0
    %331 = vmatpush.msra.mxu0 0.0
    %332 = vmatpush.msra.mxu0 0.0
    %333 = vmatpush.msra.mxu0 0.0
    %334 = vmatpush.msra.mxu0 0.0
    %335 = vmatpush.msra.mxu0 0.0
    %336 = vmatpush.msra.mxu0 0.0
    %337 = vmatpush.msra.mxu0 0.0
    %338 = vmatpush.msra.mxu0 %v223
    %339 = vmatpush.msra.mxu0 %v215
    %340 = vmatpush.msra.mxu0 %v207
    %341 = vmatpush.msra.mxu0 %v199
    %342 = vmatpush.msra.mxu0 %v191
    %343 = vmatpush.msra.mxu0 %v183
    %344 = vmatpush.msra.mxu0 %v175
    %345 = vmatpush.msra.mxu0 %v167
    %346 = vmatmul.f32.gmra.mxu0 %v228
    %v347 = vpop.f32.mrf.mxu0
    %v348 = vadd.f32 0.0, %v347
    %349 = vdwg.mxu0
    %350 = vmatpush.msra.mxu0 0.0
    %351 = vmatpush.msra.mxu0 0.0
    %352 = vmatpush.msra.mxu0 0.0
    %353 = vmatpush.msra.mxu0 0.0
    %354 = vmatpush.msra.mxu0 0.0
    %355 = vmatpush.msra.mxu0 0.0
    %356 = vmatpush.msra.mxu0 0.0
    %357 = vmatpush.msra.mxu0 0.0
    %358 = vmatpush.msra.mxu0 %v224
    %359 = vmatpush.msra.mxu0 %v216
    %360 = vmatpush.msra.mxu0 %v208
    %361 = vmatpush.msra.mxu0 %v200
    %362 = vmatpush.msra.mxu0 %v192
    %363 = vmatpush.msra.mxu0 %v184
    %364 = vmatpush.msra.mxu0 %v176
    %365 = vmatpush.msra.mxu0 %v168
    %366 = vmatmul.f32.gmra.mxu0 %v228
    %v367 = vpop.f32.mrf.mxu0
    %v368 = vadd.f32 0.0, %v367
    %369 = vdwg.mxu0
    %370 = vmatpush.msra.mxu0 0.0
    %371 = vmatpush.msra.mxu0 0.0
    %372 = vmatpush.msra.mxu0 0.0
    %373 = vmatpush.msra.mxu0 0.0
    %374 = vmatpush.msra.mxu0 0.0
    %375 = vmatpush.msra.mxu0 0.0
    %376 = vmatpush.msra.mxu0 0.0
    %377 = vmatpush.msra.mxu0 0.0
    %378 = vmatpush.msra.mxu0 %v225
    %379 = vmatpush.msra.mxu0 %v217
    %380 = vmatpush.msra.mxu0 %v209
    %381 = vmatpush.msra.mxu0 %v201
    %382 = vmatpush.msra.mxu0 %v193
    %383 = vmatpush.msra.mxu0 %v185
    %384 = vmatpush.msra.mxu0 %v177
    %385 = vmatpush.msra.mxu0 %v169
    %386 = vmatmul.f32.gmra.mxu0 %v228
    %v387 = vpop.f32.mrf.mxu0
    %v388 = vadd.f32 0.0, %v387
    %389 = vdwg.mxu0
    %v390 = vld [vmem:[#allocation7] sm:$0xff]
    %v391 = vld [vmem:[#allocation8] sm:$0xff]
    %v392 = vrot.slane %v248, 4
    %v393 = vadd.f32 %v248, %v392
    %v394 = vrot.slane %v393, 2
    %v395 = vadd.f32 %v393, %v394
    %v396 = vrot.slane %v395, 1
    %v397 = vadd.f32 %v395, %v396
    %v398 = vrot.slane %v268, 4
    %v399 = vadd.f32 %v268, %v398
    %v400 = vrot.slane %v399, 2
    %v401 = vadd.f32 %v399, %v400
    %v402 = vrot.slane %v401, 1
    %v403 = vadd.f32 %v401, %v402
    %v404 = vrot.slane %v288, 4
    %v405 = vadd.f32 %v288, %v404
    %v406 = vrot.slane %v405, 2
    %v407 = vadd.f32 %v405, %v406
    %v408 = vrot.slane %v407, 1
    %v409 = vadd.f32 %v407, %v408
    %v410 = vrot.slane %v308, 4
    %v411 = vadd.f32 %v308, %v410
    %v412 = vrot.slane %v411, 2
    %v413 = vadd.f32 %v411, %v412
    %v414 = vrot.slane %v413, 1
    %v415 = vadd.f32 %v413, %v414
    %v416 = vrot.slane %v328, 4
    %v417 = vadd.f32 %v328, %v416
    %v418 = vrot.slane %v417, 2
    %v419 = vadd.f32 %v417, %v418
    %v420 = vrot.slane %v419, 1
    %v421 = vadd.f32 %v419, %v420
    %v422 = vrot.slane %v348, 4
    %v423 = vadd.f32 %v348, %v422
    %v424 = vrot.slane %v423, 2
    %v425 = vadd.f32 %v423, %v424
    %v426 = vrot.slane %v425, 1
    %v427 = vadd.f32 %v425, %v426
    %v428 = vrot.slane %v368, 4
    %v429 = vadd.f32 %v368, %v428
    %v430 = vrot.slane %v429, 2
    %v431 = vadd.f32 %v429, %v430
    %v432 = vrot.slane %v431, 1
    %v433 = vadd.f32 %v431, %v432
    %v434 = vrot.slane %v388, 4
    %v435 = vadd.f32 %v388, %v434
    %v436 = vrot.slane %v435, 2
    %v437 = vadd.f32 %v435, %v436
    %v438 = vrot.slane %v437, 1
    %v439 = vadd.f32 %v437, %v438
    %v440 = vmul.f32 %v397, 0.125
    %v441 = vmul.f32 %v403, 0.125
    %v442 = vmul.f32 %v409, 0.125
    %v443 = vmul.f32 %v415, 0.125
    %v444 = vmul.f32 %v421, 0.125
    %v445 = vmul.f32 %v427, 0.125
    %v446 = vmul.f32 %v433, 0.125
    %v447 = vmul.f32 %v439, 0.125
    %v448 = vsub.f32 %v248, %v440
    %v449 = vsub.f32 %v268, %v441
    %v450 = vsub.f32 %v288, %v442
    %v451 = vsub.f32 %v308, %v443
    %v452 = vsub.f32 %v328, %v444
    %v453 = vsub.f32 %v348, %v445
    %v454 = vsub.f32 %v368, %v446
    %v455 = vsub.f32 %v388, %v447
    %v456 = vmul.f32 %v448, %v448
    %v457 = vmul.f32 %v449, %v449
    %v458 = vmul.f32 %v450, %v450
    %v459 = vmul.f32 %v451, %v451
    %v460 = vmul.f32 %v452, %v452
    %v461 = vmul.f32 %v453, %v453
    %v462 = vmul.f32 %v454, %v454
    %v463 = vmul.f32 %v455, %v455
    %v464 = vrot.slane %v456, 4
    %v465 = vadd.f32 %v456, %v464
    %v466 = vrot.slane %v465, 2
    %v467 = vadd.f32 %v465, %v466
    %v468 = vrot.slane %v467, 1
    %v469 = vadd.f32 %v467, %v468
    %v470 = vrot.slane %v457, 4
    %v471 = vadd.f32 %v457, %v470
    %v472 = vrot.slane %v471, 2
    %v473 = vadd.f32 %v471, %v472
    %v474 = vrot.slane %v473, 1
    %v475 = vadd.f32 %v473, %v474
    %v476 = vrot.slane %v458, 4
    %v477 = vadd.f32 %v458, %v476
    %v478 = vrot.slane %v477, 2
    %v479 = vadd.f32 %v477, %v478
    %v480 = vrot.slane %v479, 1
    %v481 = vadd.f32 %v479, %v480
    %v482 = vrot.slane %v459, 4
    %v483 = vadd.f32 %v459, %v482
    %v484 = vrot.slane %v483, 2
    %v485 = vadd.f32 %v483, %v484
    %v486 = vrot.slane %v485, 1
    %v487 = vadd.f32 %v485, %v486
    %v488 = vrot.slane %v460, 4
    %v489 = vadd.f32 %v460, %v488
    %v490 = vrot.slane %v489, 2
    %v491 = vadd.f32 %v489, %v490
    %v492 = vrot.slane %v491, 1
    %v493 = vadd.f32 %v491, %v492
    %v494 = vrot.slane %v461, 4
    %v495 = vadd.f32 %v461, %v494
    %v496 = vrot.slane %v495, 2
    %v497 = vadd.f32 %v495, %v496
    %v498 = vrot.slane %v497, 1
    %v499 = vadd.f32 %v497, %v498
    %v500 = vrot.slane %v462, 4
    %v501 = vadd.f32 %v462, %v500
    %v502 = vrot.slane %v501, 2
    %v503 = vadd.f32 %v501, %v502
    %v504 = vrot.slane %v503, 1
    %v505 = vadd.f32 %v503, %v504
    %v506 = vrot.slane %v463, 4
    %v507 = vadd.f32 %v463, %v506
    %v508 = vrot.slane %v507, 2
    %v509 = vadd.f32 %v507, %v508
    %v510 = vrot.slane %v509, 1
    %v511 = vadd.f32 %v509, %v510
    %v512 = vmul.f32 %v469, 0.125
    %v513 = vmul.f32 %v475, 0.125
    %v514 = vmul.f32 %v481, 0.125
    %v515 = vmul.f32 %v487, 0.125
    %v516 = vmul.f32 %v493, 0.125
    %v517 = vmul.f32 %v499, 0.125
    %v518 = vmul.f32 %v505, 0.125
    %v519 = vmul.f32 %v511, 0.125
    %v520 = vadd.f32 %v512, 1e-05
    %v521 = vadd.f32 %v513, 1e-05
    %v522 = vadd.f32 %v514, 1e-05
    %v523 = vadd.f32 %v515, 1e-05
    %v524 = vadd.f32 %v516, 1e-05
    %v525 = vadd.f32 %v517, 1e-05
    %v526 = vadd.f32 %v518, 1e-05
    %v527 = vadd.f32 %v519, 1e-05
    %v528 = vrsqrt.pop %v520
    %v529 = vmul.f32 %v528, %v520
    %v530 = vmul.f32 %v529, %v528
    %v531 = vmul.f32 0.5, %v530
    %v532 = vsub.f32 1.5, %v531
    %v533 = vmul.f32 %v528, %v532
    %v534 = vmul.f32 %v520, %v533
    %vm535 = vcmp.eq.f32.partialorder %v520, inf
    %v536 = vsel %vm535, %v520, %v534
    %vm537 = vcmp.eq.f32.partialorder %v520, 0.0
    %v538 = vand.u32 %v520, 2147483648
    %v539 = vsel %vm537, %v538, %v536
    %v540 = vrsqrt.pop %v521
    %v541 = vmul.f32 %v540, %v521
    %v542 = vmul.f32 %v541, %v540
    %v543 = vmul.f32 0.5, %v542
    %v544 = vsub.f32 1.5, %v543
    %v545 = vmul.f32 %v540, %v544
    %v546 = vmul.f32 %v521, %v545
    %vm547 = vcmp.eq.f32.partialorder %v521, inf
    %v548 = vsel %vm547, %v521, %v546
    %vm549 = vcmp.eq.f32.partialorder %v521, 0.0
    %v550 = vand.u32 %v521, 2147483648
    %v551 = vsel %vm549, %v550, %v548
    %v552 = vrsqrt.pop %v522
    %v553 = vmul.f32 %v552, %v522
    %v554 = vmul.f32 %v553, %v552
    %v555 = vmul.f32 0.5, %v554
    %v556 = vsub.f32 1.5, %v555
    %v557 = vmul.f32 %v552, %v556
    %v558 = vmul.f32 %v522, %v557
    %vm559 = vcmp.eq.f32.partialorder %v522, inf
    %v560 = vsel %vm559, %v522, %v558
    %vm561 = vcmp.eq.f32.partialorder %v522, 0.0
    %v562 = vand.u32 %v522, 2147483648
    %v563 = vsel %vm561, %v562, %v560
    %v564 = vrsqrt.pop %v523
    %v565 = vmul.f32 %v564, %v523
    %v566 = vmul.f32 %v565, %v564
    %v567 = vmul.f32 0.5, %v566
    %v568 = vsub.f32 1.5, %v567
    %v569 = vmul.f32 %v564, %v568
    %v570 = vmul.f32 %v523, %v569
    %vm571 = vcmp.eq.f32.partialorder %v523, inf
    %v572 = vsel %vm571, %v523, %v570
    %vm573 = vcmp.eq.f32.partialorder %v523, 0.0
    %v574 = vand.u32 %v523, 2147483648
    %v575 = vsel %vm573, %v574, %v572
    %v576 = vrsqrt.pop %v524
    %v577 = vmul.f32 %v576, %v524
    %v578 = vmul.f32 %v577, %v576
    %v579 = vmul.f32 0.5, %v578
    %v580 = vsub.f32 1.5, %v579
    %v581 = vmul.f32 %v576, %v580
    %v582 = vmul.f32 %v524, %v581
    %vm583 = vcmp.eq.f32.partialorder %v524, inf
    %v584 = vsel %vm583, %v524, %v582
    %vm585 = vcmp.eq.f32.partialorder %v524, 0.0
    %v586 = vand.u32 %v524, 2147483648
    %v587 = vsel %vm585, %v586, %v584
    %v588 = vrsqrt.pop %v525
    %v589 = vmul.f32 %v588, %v525
    %v590 = vmul.f32 %v589, %v588
    %v591 = vmul.f32 0.5, %v590
    %v592 = vsub.f32 1.5, %v591
    %v593 = vmul.f32 %v588, %v592
    %v594 = vmul.f32 %v525, %v593
    %vm595 = vcmp.eq.f32.partialorder %v525, inf
    %v596 = vsel %vm595, %v525, %v594
    %vm597 = vcmp.eq.f32.partialorder %v525, 0.0
    %v598 = vand.u32 %v525, 2147483648
    %v599 = vsel %vm597, %v598, %v596
    %v600 = vrsqrt.pop %v526
    %v601 = vmul.f32 %v600, %v526
    %v602 = vmul.f32 %v601, %v600
    %v603 = vmul.f32 0.5, %v602
    %v604 = vsub.f32 1.5, %v603
    %v605 = vmul.f32 %v600, %v604
    %v606 = vmul.f32 %v526, %v605
    %vm607 = vcmp.eq.f32.partialorder %v526, inf
    %v608 = vsel %vm607, %v526, %v606
    %vm609 = vcmp.eq.f32.partialorder %v526, 0.0
    %v610 = vand.u32 %v526, 2147483648
    %v611 = vsel %vm609, %v610, %v608
    %v612 = vrsqrt.pop %v527
    %v613 = vmul.f32 %v612, %v527
    %v614 = vmul.f32 %v613, %v612
    %v615 = vmul.f32 0.5, %v614
    %v616 = vsub.f32 1.5, %v615
    %v617 = vmul.f32 %v612, %v616
    %v618 = vmul.f32 %v527, %v617
    %vm619 = vcmp.eq.f32.partialorder %v527, inf
    %v620 = vsel %vm619, %v527, %v618
    %vm621 = vcmp.eq.f32.partialorder %v527, 0.0
    %v622 = vand.u32 %v527, 2147483648
    %v623 = vsel %vm621, %v622, %v620
    %v632 = vrot.slane %v551, 7
    %v633 = vrot.slane %v563, 6
    %v634 = vrot.slane %v575, 5
    %v635 = vrot.slane %v587, 4
    %v636 = vrot.slane %v599, 3
    %v637 = vrot.slane %v611, 2
    %v638 = vrot.slane %v623, 1
    %vm639 = vcmask 1040384
    %v640 = vsel %vm639, %v539, %v632
    %vm641 = vcmask 1042434
    %v642 = vsel %vm641, %v633, %v634
    %vm643 = vcmask 1041408
    %v644 = vsel %vm643, %v640, %v642
    %vm645 = vcmask 1044484
    %v646 = vsel %vm645, %v635, %v636
    %vm647 = vcmask 1046534
    %v648 = vsel %vm647, %v637, %v638
    %vm649 = vcmask 1045508
    %v650 = vsel %vm649, %v646, %v648
    %vm651 = vcmask 1043456
    %v652 = vsel %vm651, %v644, %v650
    %v654 = vrcp.pop %v652
    %v655 = vmul.f32 %v652, %v654
    %v656 = vsub.f32 1.0, %v655
    %v657 = vmul.f32 %v654, %v656
    %v658 = vadd.f32 %v654, %v657
    %vm659 = vweird.f32 %v652
    %vm660 = vweird.f32 %v654
    %vm661 = vmor %vm659, %vm660
    %v662 = vsel %vm661, %v654, %v658
    %v663 = vand.u32 2147483647, %v652
    %vm664 = vcmp.eq.f32.partialorder %v663, 8.507059e+37
    %v665 = vand.u32 %v652, 2147483648
    %v666 = vor.u32 1.1754944e-38, %v665
    %v667 = vsel %vm664, %v666, %v662
    %v668 = vmul.f32 %v390, %v667
    %v670 = vperm.slane %v668, 0
    %v671 = vperm.slane %v668, 1
    %v672 = vperm.slane %v668, 2
    %v673 = vperm.slane %v668, 3
    %v674 = vperm.slane %v668, 4
    %v675 = vperm.slane %v668, 5
    %v676 = vperm.slane %v668, 6
    %v677 = vperm.slane %v668, 7
    %v686 = vmul.f32 %v448, %v670
    %v687 = vmul.f32 %v449, %v671
    %v688 = vmul.f32 %v450, %v672
    %v689 = vmul.f32 %v451, %v673
    %v690 = vmul.f32 %v452, %v674
    %v691 = vmul.f32 %v453, %v675
    %v692 = vmul.f32 %v454, %v676
    %v693 = vmul.f32 %v455, %v677
    %v695 = vperm.slane %v391, 0
    %v696 = vperm.slane %v391, 1
    %v697 = vperm.slane %v391, 2
    %v698 = vperm.slane %v391, 3
    %v699 = vperm.slane %v391, 4
    %v700 = vperm.slane %v391, 5
    %v701 = vperm.slane %v391, 6
    %v702 = vperm.slane %v391, 7
    %v711 = vadd.f32 %v686, %v695
    %v712 = vadd.f32 %v687, %v696
    %v713 = vadd.f32 %v688, %v697
    %v714 = vadd.f32 %v689, %v698
    %v715 = vadd.f32 %v690, %v699
    %v716 = vadd.f32 %v691, %v700
    %v717 = vadd.f32 %v692, %v701
    %v718 = vadd.f32 %v693, %v702
    %v719 = vmin.f32 %v711, 20.0
    %v720 = vmin.f32 %v712, 20.0
    %v721 = vmin.f32 %v713, 20.0
    %v722 = vmin.f32 %v714, 20.0
    %v723 = vmin.f32 %v715, 20.0
    %v724 = vmin.f32 %v716, 20.0
    %v725 = vmin.f32 %v717, 20.0
    %v726 = vmin.f32 %v718, 20.0
    %v727 = vmul.f32 %v719, 1.442695
    %v728 = vpow.pop %v727
    %v729 = vmul.f32 %v720, 1.442695
    %v730 = vpow.pop %v729
    %v731 = vmul.f32 %v721, 1.442695
    %v732 = vpow.pop %v731
    %v733 = vmul.f32 %v722, 1.442695
    %v734 = vpow.pop %v733
    %v735 = vmul.f32 %v723, 1.442695
    %v736 = vpow.pop %v735
    %v737 = vmul.f32 %v724, 1.442695
    %v738 = vpow.pop %v737
    %v739 = vmul.f32 %v725, 1.442695
    %v740 = vpow.pop %v739
    %v741 = vmul.f32 %v726, 1.442695
    %v742 = vpow.pop %v741
    %v743 = vadd.f32 %v728, 2.0
    %v744 = vadd.f32 %v730, 2.0
    %v745 = vadd.f32 %v732, 2.0
    %v746 = vadd.f32 %v734, 2.0
    %v747 = vadd.f32 %v736, 2.0
    %v748 = vadd.f32 %v738, 2.0
    %v749 = vadd.f32 %v740, 2.0
    %v750 = vadd.f32 %v742, 2.0
    %v751 = vmul.f32 %v728, %v743
    %v752 = vmul.f32 %v730, %v744
    %v753 = vmul.f32 %v732, %v745
    %v754 = vmul.f32 %v734, %v746
    %v755 = vmul.f32 %v736, %v747
    %v756 = vmul.f32 %v738, %v748
    %v757 = vmul.f32 %v740, %v749
    %v758 = vmul.f32 %v742, %v750
    %v759 = vadd.f32 %v751, 2.0
    %v760 = vadd.f32 %v752, 2.0
    %v761 = vadd.f32 %v753, 2.0
    %v762 = vadd.f32 %v754, 2.0
    %v763 = vadd.f32 %v755, 2.0
    %v764 = vadd.f32 %v756, 2.0
    %v765 = vadd.f32 %v757, 2.0
    %v766 = vadd.f32 %v758, 2.0
    %v767 = vrcp.pop %v759
    %v768 = vmul.f32 %v759, %v767
    %v769 = vsub.f32 1.0, %v768
    %v770 = vmul.f32 %v767, %v769
    %v771 = vadd.f32 %v767, %v770
    %vm772 = vweird.f32 %v759
    %vm773 = vweird.f32 %v767
    %vm774 = vmor %vm772, %vm773
    %v775 = vsel %vm774, %v767, %v771
    %v776 = vand.u32 2147483647, %v759
    %vm777 = vcmp.eq.f32.partialorder %v776, 8.507059e+37
    %v778 = vand.u32 %v759, 2147483648
    %v779 = vor.u32 1.1754944e-38, %v778
    %v780 = vsel %vm777, %v779, %v775
    %v781 = vmul.f32 %v751, %v780
    %v782 = vrcp.pop %v760
    %v783 = vmul.f32 %v760, %v782
    %v784 = vsub.f32 1.0, %v783
    %v785 = vmul.f32 %v782, %v784
    %v786 = vadd.f32 %v782, %v785
    %vm787 = vweird.f32 %v760
    %vm788 = vweird.f32 %v782
    %vm789 = vmor %vm787, %vm788
    %v790 = vsel %vm789, %v782, %v786
    %v791 = vand.u32 2147483647, %v760
    %vm792 = vcmp.eq.f32.partialorder %v791, 8.507059e+37
    %v793 = vand.u32 %v760, 2147483648
    %v794 = vor.u32 1.1754944e-38, %v793
    %v795 = vsel %vm792, %v794, %v790
    %v796 = vmul.f32 %v752, %v795
    %v797 = vrcp.pop %v761
    %v798 = vmul.f32 %v761, %v797
    %v799 = vsub.f32 1.0, %v798
    %v800 = vmul.f32 %v797, %v799
    %v801 = vadd.f32 %v797, %v800
    %vm802 = vweird.f32 %v761
    %vm803 = vweird.f32 %v797
    %vm804 = vmor %vm802, %vm803
    %v805 = vsel %vm804, %v797, %v801
    %v806 = vand.u32 2147483647, %v761
    %vm807 = vcmp.eq.f32.partialorder %v806, 8.507059e+37
    %v808 = vand.u32 %v761, 2147483648
    %v809 = vor.u32 1.1754944e-38, %v808
    %v810 = vsel %vm807, %v809, %v805
    %v811 = vmul.f32 %v753, %v810
    %v812 = vrcp.pop %v762
    %v813 = vmul.f32 %v762, %v812
    %v814 = vsub.f32 1.0, %v813
    %v815 = vmul.f32 %v812, %v814
    %v816 = vadd.f32 %v812, %v815
    %vm817 = vweird.f32 %v762
    %vm818 = vweird.f32 %v812
    %vm819 = vmor %vm817, %vm818
    %v820 = vsel %vm819, %v812, %v816
    %v821 = vand.u32 2147483647, %v762
    %vm822 = vcmp.eq.f32.partialorder %v821, 8.507059e+37
    %v823 = vand.u32 %v762, 2147483648
    %v824 = vor.u32 1.1754944e-38, %v823
    %v825 = vsel %vm822, %v824, %v820
    %v826 = vmul.f32 %v754, %v825
    %v827 = vrcp.pop %v763
    %v828 = vmul.f32 %v763, %v827
    %v829 = vsub.f32 1.0, %v828
    %v830 = vmul.f32 %v827, %v829
    %v831 = vadd.f32 %v827, %v830
    %vm832 = vweird.f32 %v763
    %vm833 = vweird.f32 %v827
    %vm834 = vmor %vm832, %vm833
    %v835 = vsel %vm834, %v827, %v831
    %v836 = vand.u32 2147483647, %v763
    %vm837 = vcmp.eq.f32.partialorder %v836, 8.507059e+37
    %v838 = vand.u32 %v763, 2147483648
    %v839 = vor.u32 1.1754944e-38, %v838
    %v840 = vsel %vm837, %v839, %v835
    %v841 = vmul.f32 %v755, %v840
    %v842 = vrcp.pop %v764
    %v843 = vmul.f32 %v764, %v842
    %v844 = vsub.f32 1.0, %v843
    %v845 = vmul.f32 %v842, %v844
    %v846 = vadd.f32 %v842, %v845
    %vm847 = vweird.f32 %v764
    %vm848 = vweird.f32 %v842
    %vm849 = vmor %vm847, %vm848
    %v850 = vsel %vm849, %v842, %v846
    %v851 = vand.u32 2147483647, %v764
    %vm852 = vcmp.eq.f32.partialorder %v851, 8.507059e+37
    %v853 = vand.u32 %v764, 2147483648
    %v854 = vor.u32 1.1754944e-38, %v853
    %v855 = vsel %vm852, %v854, %v850
    %v856 = vmul.f32 %v756, %v855
    %v857 = vrcp.pop %v765
    %v858 = vmul.f32 %v765, %v857
    %v859 = vsub.f32 1.0, %v858
    %v860 = vmul.f32 %v857, %v859
    %v861 = vadd.f32 %v857, %v860
    %vm862 = vweird.f32 %v765
    %vm863 = vweird.f32 %v857
    %vm864 = vmor %vm862, %vm863
    %v865 = vsel %vm864, %v857, %v861
    %v866 = vand.u32 2147483647, %v765
    %vm867 = vcmp.eq.f32.partialorder %v866, 8.507059e+37
    %v868 = vand.u32 %v765, 2147483648
    %v869 = vor.u32 1.1754944e-38, %v868
    %v870 = vsel %vm867, %v869, %v865
    %v871 = vmul.f32 %v757, %v870
    %v872 = vrcp.pop %v766
    %v873 = vmul.f32 %v766, %v872
    %v874 = vsub.f32 1.0, %v873
    %v875 = vmul.f32 %v872, %v874
    %v876 = vadd.f32 %v872, %v875
    %vm877 = vweird.f32 %v766
    %vm878 = vweird.f32 %v872
    %vm879 = vmor %vm877, %vm878
    %v880 = vsel %vm879, %v872, %v876
    %v881 = vand.u32 2147483647, %v766
    %vm882 = vcmp.eq.f32.partialorder %v881, 8.507059e+37
    %v883 = vand.u32 %v766, 2147483648
    %v884 = vor.u32 1.1754944e-38, %v883
    %v885 = vsel %vm882, %v884, %v880
    %v886 = vmul.f32 %v758, %v885
    %vm887 = vcmp.gt.f32.partialorder %v711, 20.0
    %vm888 = vcmp.gt.f32.partialorder %v712, 20.0
    %vm889 = vcmp.gt.f32.partialorder %v713, 20.0
    %vm890 = vcmp.gt.f32.partialorder %v714, 20.0
    %vm891 = vcmp.gt.f32.partialorder %v715, 20.0
    %vm892 = vcmp.gt.f32.partialorder %v716, 20.0
    %vm893 = vcmp.gt.f32.partialorder %v717, 20.0
    %vm894 = vcmp.gt.f32.partialorder %v718, 20.0
    %v895 = vmul.f32 %v711, %v781
    %v896 = vmul.f32 %v712, %v796
    %v897 = vmul.f32 %v713, %v811
    %v898 = vmul.f32 %v714, %v826
    %v899 = vmul.f32 %v715, %v841
    %v900 = vmul.f32 %v716, %v856
    %v901 = vmul.f32 %v717, %v871
    %v902 = vmul.f32 %v718, %v886
    %v903 = vsel %vm887, %v711, %v895
    %v904 = vsel %vm888, %v712, %v896
    %v905 = vsel %vm889, %v713, %v897
    %v906 = vsel %vm890, %v714, %v898
    %v907 = vsel %vm891, %v715, %v899
    %v908 = vsel %vm892, %v716, %v900
    %v909 = vsel %vm893, %v717, %v901
    %v910 = vsel %vm894, %v718, %v902
    %v911 = vld [vmem:[#allocation10] sm:$0xff]
    %v912 = vld [vmem:[#allocation10 + $0x8] sm:$0xff]
    %v913 = vld [vmem:[#allocation10 + $0x10] sm:$0xff]
    %v914 = vld [vmem:[#allocation10 + $0x18] sm:$0xff]
    %v915 = vld [vmem:[#allocation10 + $0x20] sm:$0xff]
    %v916 = vld [vmem:[#allocation10 + $0x28] sm:$0xff]
    %v917 = vld [vmem:[#allocation10 + $0x30] sm:$0xff]
    %v918 = vld [vmem:[#allocation10 + $0x38] sm:$0xff]
    %v919 = vld [vmem:[#allocation10 + $0x40] sm:$0xff]
    %v920 = vld [vmem:[#allocation10 + $0x48] sm:$0xff]
    %v921 = vld [vmem:[#allocation10 + $0x50] sm:$0xff]
    %v922 = vld [vmem:[#allocation10 + $0x58] sm:$0xff]
    %v923 = vld [vmem:[#allocation10 + $0x60] sm:$0xff]
    %v924 = vld [vmem:[#allocation10 + $0x68] sm:$0xff]
    %v925 = vld [vmem:[#allocation10 + $0x70] sm:$0xff]
    %v926 = vld [vmem:[#allocation10 + $0x78] sm:$0xff]
    %v927 = vld [vmem:[#allocation10 + $0x80] sm:$0xff]
    %v928 = vld [vmem:[#allocation10 + $0x88] sm:$0xff]
    %v929 = vld [vmem:[#allocation10 + $0x90] sm:$0xff]
    %v930 = vld [vmem:[#allocation10 + $0x98] sm:$0xff]
    %v931 = vld [vmem:[#allocation10 + $0xa0] sm:$0xff]
    %v932 = vld [vmem:[#allocation10 + $0xa8] sm:$0xff]
    %v933 = vld [vmem:[#allocation10 + $0xb0] sm:$0xff]
    %v934 = vld [vmem:[#allocation10 + $0xb8] sm:$0xff]
    %v935 = vld [vmem:[#allocation10 + $0xc0] sm:$0xff]
    %v936 = vld [vmem:[#allocation10 + $0xc8] sm:$0xff]
    %v937 = vld [vmem:[#allocation10 + $0xd0] sm:$0xff]
    %v938 = vld [vmem:[#allocation10 + $0xd8] sm:$0xff]
    %v939 = vld [vmem:[#allocation10 + $0xe0] sm:$0xff]
    %v940 = vld [vmem:[#allocation10 + $0xe8] sm:$0xff]
    %v941 = vld [vmem:[#allocation10 + $0xf0] sm:$0xff]
    %v942 = vld [vmem:[#allocation10 + $0xf8] sm:$0xff]
    %v943 = vld [vmem:[#allocation10 + $0x100] sm:$0xff]
    %v944 = vld [vmem:[#allocation10 + $0x108] sm:$0xff]
    %v945 = vld [vmem:[#allocation10 + $0x110] sm:$0xff]
    %v946 = vld [vmem:[#allocation10 + $0x118] sm:$0xff]
    %v947 = vld [vmem:[#allocation10 + $0x120] sm:$0xff]
    %v948 = vld [vmem:[#allocation10 + $0x128] sm:$0xff]
    %v949 = vld [vmem:[#allocation10 + $0x130] sm:$0xff]
    %v950 = vld [vmem:[#allocation10 + $0x138] sm:$0xff]
    %v951 = vld [vmem:[#allocation10 + $0x140] sm:$0xff]
    %v952 = vld [vmem:[#allocation10 + $0x148] sm:$0xff]
    %v953 = vld [vmem:[#allocation10 + $0x150] sm:$0xff]
    %v954 = vld [vmem:[#allocation10 + $0x158] sm:$0xff]
    %v955 = vld [vmem:[#allocation10 + $0x160] sm:$0xff]
    %v956 = vld [vmem:[#allocation10 + $0x168] sm:$0xff]
    %v957 = vld [vmem:[#allocation10 + $0x170] sm:$0xff]
    %v958 = vld [vmem:[#allocation10 + $0x178] sm:$0xff]
    %v959 = vld [vmem:[#allocation10 + $0x180] sm:$0xff]
    %v960 = vld [vmem:[#allocation10 + $0x188] sm:$0xff]
    %v961 = vld [vmem:[#allocation10 + $0x190] sm:$0xff]
    %v962 = vld [vmem:[#allocation10 + $0x198] sm:$0xff]
    %v963 = vld [vmem:[#allocation10 + $0x1a0] sm:$0xff]
    %v964 = vld [vmem:[#allocation10 + $0x1a8] sm:$0xff]
    %v965 = vld [vmem:[#allocation10 + $0x1b0] sm:$0xff]
    %v966 = vld [vmem:[#allocation10 + $0x1b8] sm:$0xff]
    %v967 = vld [vmem:[#allocation10 + $0x1c0] sm:$0xff]
    %v968 = vld [vmem:[#allocation10 + $0x1c8] sm:$0xff]
    %v969 = vld [vmem:[#allocation10 + $0x1d0] sm:$0xff]
    %v970 = vld [vmem:[#allocation10 + $0x1d8] sm:$0xff]
    %v971 = vld [vmem:[#allocation10 + $0x1e0] sm:$0xff]
    %v972 = vld [vmem:[#allocation10 + $0x1e8] sm:$0xff]
    %v973 = vld [vmem:[#allocation10 + $0x1f0] sm:$0xff]
    %v974 = vld [vmem:[#allocation10 + $0x1f8] sm:$0xff]
    %v975 = vld [vmem:[#allocation10 + $0x200] sm:$0xff]
    %v976 = vld [vmem:[#allocation10 + $0x208] sm:$0xff]
    %v977 = vld [vmem:[#allocation10 + $0x210] sm:$0xff]
    %v978 = vld [vmem:[#allocation10 + $0x218] sm:$0xff]
    %v979 = vld [vmem:[#allocation10 + $0x220] sm:$0xff]
    %v980 = vld [vmem:[#allocation10 + $0x228] sm:$0xff]
    %v981 = vld [vmem:[#allocation10 + $0x230] sm:$0xff]
    %v982 = vld [vmem:[#allocation10 + $0x238] sm:$0xff]
    %v983 = vld [vmem:[#allocation10 + $0x240] sm:$0xff]
    %v984 = vld [vmem:[#allocation10 + $0x248] sm:$0xff]
    %v985 = vld [vmem:[#allocation10 + $0x250] sm:$0xff]
    %v986 = vld [vmem:[#allocation10 + $0x258] sm:$0xff]
    %v987 = vld [vmem:[#allocation10 + $0x260] sm:$0xff]
    %v988 = vld [vmem:[#allocation10 + $0x268] sm:$0xff]
    %v989 = vld [vmem:[#allocation10 + $0x270] sm:$0xff]
    %v990 = vld [vmem:[#allocation10 + $0x278] sm:$0xff]
    %v991 = vld [vmem:[#allocation10 + $0x280] sm:$0xff]
    %v992 = vld [vmem:[#allocation10 + $0x288] sm:$0xff]
    %v993 = vld [vmem:[#allocation10 + $0x290] sm:$0xff]
    %v994 = vld [vmem:[#allocation10 + $0x298] sm:$0xff]
    %v995 = vld [vmem:[#allocation10 + $0x2a0] sm:$0xff]
    %v996 = vld [vmem:[#allocation10 + $0x2a8] sm:$0xff]
    %v997 = vld [vmem:[#allocation10 + $0x2b0] sm:$0xff]
    %v998 = vld [vmem:[#allocation10 + $0x2b8] sm:$0xff]
    %v999 = vld [vmem:[#allocation10 + $0x2c0] sm:$0xff]
    %v1000 = vld [vmem:[#allocation10 + $0x2c8] sm:$0xff]
    %v1001 = vld [vmem:[#allocation10 + $0x2d0] sm:$0xff]
    %v1002 = vld [vmem:[#allocation10 + $0x2d8] sm:$0xff]
    %v1003 = vld [vmem:[#allocation10 + $0x2e0] sm:$0xff]
    %v1004 = vld [vmem:[#allocation10 + $0x2e8] sm:$0xff]
    %v1005 = vld [vmem:[#allocation10 + $0x2f0] sm:$0xff]
    %v1006 = vld [vmem:[#allocation10 + $0x2f8] sm:$0xff]
    %v1007 = vld [vmem:[#allocation10 + $0x300] sm:$0xff]
    %v1008 = vld [vmem:[#allocation10 + $0x308] sm:$0xff]
    %v1009 = vld [vmem:[#allocation10 + $0x310] sm:$0xff]
    %v1010 = vld [vmem:[#allocation10 + $0x318] sm:$0xff]
    %v1011 = vld [vmem:[#allocation10 + $0x320] sm:$0xff]
    %v1012 = vld [vmem:[#allocation10 + $0x328] sm:$0xff]
    %v1013 = vld [vmem:[#allocation10 + $0x330] sm:$0xff]
    %v1014 = vld [vmem:[#allocation10 + $0x338] sm:$0xff]
    %v1015 = vld [vmem:[#allocation10 + $0x340] sm:$0xff]
    %v1016 = vld [vmem:[#allocation10 + $0x348] sm:$0xff]
    %v1017 = vld [vmem:[#allocation10 + $0x350] sm:$0xff]
    %v1018 = vld [vmem:[#allocation10 + $0x358] sm:$0xff]
    %v1019 = vld [vmem:[#allocation10 + $0x360] sm:$0xff]
    %v1020 = vld [vmem:[#allocation10 + $0x368] sm:$0xff]
    %v1021 = vld [vmem:[#allocation10 + $0x370] sm:$0xff]
    %v1022 = vld [vmem:[#allocation10 + $0x378] sm:$0xff]
    %v1023 = vld [vmem:[#allocation10 + $0x380] sm:$0xff]
    %v1024 = vld [vmem:[#allocation10 + $0x388] sm:$0xff]
    %v1025 = vld [vmem:[#allocation10 + $0x390] sm:$0xff]
    %v1026 = vld [vmem:[#allocation10 + $0x398] sm:$0xff]
    %v1027 = vld [vmem:[#allocation10 + $0x3a0] sm:$0xff]
    %v1028 = vld [vmem:[#allocation10 + $0x3a8] sm:$0xff]
    %v1029 = vld [vmem:[#allocation10 + $0x3b0] sm:$0xff]
    %v1030 = vld [vmem:[#allocation10 + $0x3b8] sm:$0xff]
    %v1031 = vld [vmem:[#allocation10 + $0x3c0] sm:$0xff]
    %v1032 = vld [vmem:[#allocation10 + $0x3c8] sm:$0xff]
    %v1033 = vld [vmem:[#allocation10 + $0x3d0] sm:$0xff]
    %v1034 = vld [vmem:[#allocation10 + $0x3d8] sm:$0xff]
    %v1035 = vld [vmem:[#allocation10 + $0x3e0] sm:$0xff]
    %v1036 = vld [vmem:[#allocation10 + $0x3e8] sm:$0xff]
    %v1037 = vld [vmem:[#allocation10 + $0x3f0] sm:$0xff]
    %v1038 = vld [vmem:[#allocation10 + $0x3f8] sm:$0xff]
    %v1039 = vld [vmem:[#allocation10 + $0x400] sm:$0xff]
    %v1040 = vld [vmem:[#allocation10 + $0x408] sm:$0xff]
    %v1041 = vld [vmem:[#allocation10 + $0x410] sm:$0xff]
    %v1042 = vld [vmem:[#allocation10 + $0x418] sm:$0xff]
    %v1043 = vld [vmem:[#allocation10 + $0x420] sm:$0xff]
    %v1044 = vld [vmem:[#allocation10 + $0x428] sm:$0xff]
    %v1045 = vld [vmem:[#allocation10 + $0x430] sm:$0xff]
    %v1046 = vld [vmem:[#allocation10 + $0x438] sm:$0xff]
    %v1047 = vld [vmem:[#allocation10 + $0x440] sm:$0xff]
    %v1048 = vld [vmem:[#allocation10 + $0x448] sm:$0xff]
    %v1049 = vld [vmem:[#allocation10 + $0x450] sm:$0xff]
    %v1050 = vld [vmem:[#allocation10 + $0x458] sm:$0xff]
    %v1051 = vld [vmem:[#allocation10 + $0x460] sm:$0xff]
    %v1052 = vld [vmem:[#allocation10 + $0x468] sm:$0xff]
    %v1053 = vld [vmem:[#allocation10 + $0x470] sm:$0xff]
    %v1054 = vld [vmem:[#allocation10 + $0x478] sm:$0xff]
    %v1055 = vld [vmem:[#allocation10 + $0x480] sm:$0xff]
    %v1056 = vld [vmem:[#allocation10 + $0x488] sm:$0xff]
    %v1057 = vld [vmem:[#allocation10 + $0x490] sm:$0xff]
    %v1058 = vld [vmem:[#allocation10 + $0x498] sm:$0xff]
    %v1059 = vld [vmem:[#allocation10 + $0x4a0] sm:$0xff]
    %v1060 = vld [vmem:[#allocation10 + $0x4a8] sm:$0xff]
    %v1061 = vld [vmem:[#allocation10 + $0x4b0] sm:$0xff]
    %v1062 = vld [vmem:[#allocation10 + $0x4b8] sm:$0xff]
    %v1063 = vld [vmem:[#allocation10 + $0x4c0] sm:$0xff]
    %v1064 = vld [vmem:[#allocation10 + $0x4c8] sm:$0xff]
    %v1065 = vld [vmem:[#allocation10 + $0x4d0] sm:$0xff]
    %v1066 = vld [vmem:[#allocation10 + $0x4d8] sm:$0xff]
    %v1067 = vld [vmem:[#allocation10 + $0x4e0] sm:$0xff]
    %v1068 = vld [vmem:[#allocation10 + $0x4e8] sm:$0xff]
    %v1069 = vld [vmem:[#allocation10 + $0x4f0] sm:$0xff]
    %v1070 = vld [vmem:[#allocation10 + $0x4f8] sm:$0xff]
    %v1071 = vld [vmem:[#allocation10 + $0x500] sm:$0xff]
    %v1072 = vld [vmem:[#allocation10 + $0x508] sm:$0xff]
    %v1073 = vld [vmem:[#allocation10 + $0x510] sm:$0xff]
    %v1074 = vld [vmem:[#allocation10 + $0x518] sm:$0xff]
    %v1075 = vld [vmem:[#allocation10 + $0x520] sm:$0xff]
    %v1076 = vld [vmem:[#allocation10 + $0x528] sm:$0xff]
    %v1077 = vld [vmem:[#allocation10 + $0x530] sm:$0xff]
    %v1078 = vld [vmem:[#allocation10 + $0x538] sm:$0xff]
    %v1079 = vld [vmem:[#allocation10 + $0x540] sm:$0xff]
    %v1080 = vld [vmem:[#allocation10 + $0x548] sm:$0xff]
    %v1081 = vld [vmem:[#allocation10 + $0x550] sm:$0xff]
    %v1082 = vld [vmem:[#allocation10 + $0x558] sm:$0xff]
    %v1083 = vld [vmem:[#allocation10 + $0x560] sm:$0xff]
    %v1084 = vld [vmem:[#allocation10 + $0x568] sm:$0xff]
    %v1085 = vld [vmem:[#allocation10 + $0x570] sm:$0xff]
    %v1086 = vld [vmem:[#allocation10 + $0x578] sm:$0xff]
    %v1087 = vld [vmem:[#allocation10 + $0x580] sm:$0xff]
    %v1088 = vld [vmem:[#allocation10 + $0x588] sm:$0xff]
    %v1089 = vld [vmem:[#allocation10 + $0x590] sm:$0xff]
    %v1090 = vld [vmem:[#allocation10 + $0x598] sm:$0xff]
    %v1091 = vld [vmem:[#allocation10 + $0x5a0] sm:$0xff]
    %v1092 = vld [vmem:[#allocation10 + $0x5a8] sm:$0xff]
    %v1093 = vld [vmem:[#allocation10 + $0x5b0] sm:$0xff]
    %v1094 = vld [vmem:[#allocation10 + $0x5b8] sm:$0xff]
    %v1095 = vld [vmem:[#allocation10 + $0x5c0] sm:$0xff]
    %v1096 = vld [vmem:[#allocation10 + $0x5c8] sm:$0xff]
    %v1097 = vld [vmem:[#allocation10 + $0x5d0] sm:$0xff]
    %v1098 = vld [vmem:[#allocation10 + $0x5d8] sm:$0xff]
    %v1099 = vld [vmem:[#allocation10 + $0x5e0] sm:$0xff]
    %v1100 = vld [vmem:[#allocation10 + $0x5e8] sm:$0xff]
    %v1101 = vld [vmem:[#allocation10 + $0x5f0] sm:$0xff]
    %v1102 = vld [vmem:[#allocation10 + $0x5f8] sm:$0xff]
    %v1103 = vld [vmem:[#allocation10 + $0x600] sm:$0xff]
    %v1104 = vld [vmem:[#allocation10 + $0x608] sm:$0xff]
    %v1105 = vld [vmem:[#allocation10 + $0x610] sm:$0xff]
    %v1106 = vld [vmem:[#allocation10 + $0x618] sm:$0xff]
    %v1107 = vld [vmem:[#allocation10 + $0x620] sm:$0xff]
    %v1108 = vld [vmem:[#allocation10 + $0x628] sm:$0xff]
    %v1109 = vld [vmem:[#allocation10 + $0x630] sm:$0xff]
    %v1110 = vld [vmem:[#allocation10 + $0x638] sm:$0xff]
    %v1111 = vld [vmem:[#allocation10 + $0x640] sm:$0xff]
    %v1112 = vld [vmem:[#allocation10 + $0x648] sm:$0xff]
    %v1113 = vld [vmem:[#allocation10 + $0x650] sm:$0xff]
    %v1114 = vld [vmem:[#allocation10 + $0x658] sm:$0xff]
    %v1115 = vld [vmem:[#allocation10 + $0x660] sm:$0xff]
    %v1116 = vld [vmem:[#allocation10 + $0x668] sm:$0xff]
    %v1117 = vld [vmem:[#allocation10 + $0x670] sm:$0xff]
    %v1118 = vld [vmem:[#allocation10 + $0x678] sm:$0xff]
    %v1119 = vld [vmem:[#allocation10 + $0x680] sm:$0xff]
    %v1120 = vld [vmem:[#allocation10 + $0x688] sm:$0xff]
    %v1121 = vld [vmem:[#allocation10 + $0x690] sm:$0xff]
    %v1122 = vld [vmem:[#allocation10 + $0x698] sm:$0xff]
    %v1123 = vld [vmem:[#allocation10 + $0x6a0] sm:$0xff]
    %v1124 = vld [vmem:[#allocation10 + $0x6a8] sm:$0xff]
    %v1125 = vld [vmem:[#allocation10 + $0x6b0] sm:$0xff]
    %v1126 = vld [vmem:[#allocation10 + $0x6b8] sm:$0xff]
    %v1127 = vld [vmem:[#allocation10 + $0x6c0] sm:$0xff]
    %v1128 = vld [vmem:[#allocation10 + $0x6c8] sm:$0xff]
    %v1129 = vld [vmem:[#allocation10 + $0x6d0] sm:$0xff]
    %v1130 = vld [vmem:[#allocation10 + $0x6d8] sm:$0xff]
    %v1131 = vld [vmem:[#allocation10 + $0x6e0] sm:$0xff]
    %v1132 = vld [vmem:[#allocation10 + $0x6e8] sm:$0xff]
    %v1133 = vld [vmem:[#allocation10 + $0x6f0] sm:$0xff]
    %v1134 = vld [vmem:[#allocation10 + $0x6f8] sm:$0xff]
    %v1135 = vld [vmem:[#allocation10 + $0x700] sm:$0xff]
    %v1136 = vld [vmem:[#allocation10 + $0x708] sm:$0xff]
    %v1137 = vld [vmem:[#allocation10 + $0x710] sm:$0xff]
    %v1138 = vld [vmem:[#allocation10 + $0x718] sm:$0xff]
    %v1139 = vld [vmem:[#allocation10 + $0x720] sm:$0xff]
    %v1140 = vld [vmem:[#allocation10 + $0x728] sm:$0xff]
    %v1141 = vld [vmem:[#allocation10 + $0x730] sm:$0xff]
    %v1142 = vld [vmem:[#allocation10 + $0x738] sm:$0xff]
    %v1143 = vld [vmem:[#allocation10 + $0x740] sm:$0xff]
    %v1144 = vld [vmem:[#allocation10 + $0x748] sm:$0xff]
    %v1145 = vld [vmem:[#allocation10 + $0x750] sm:$0xff]
    %v1146 = vld [vmem:[#allocation10 + $0x758] sm:$0xff]
    %v1147 = vld [vmem:[#allocation10 + $0x760] sm:$0xff]
    %v1148 = vld [vmem:[#allocation10 + $0x768] sm:$0xff]
    %v1149 = vld [vmem:[#allocation10 + $0x770] sm:$0xff]
    %v1150 = vld [vmem:[#allocation10 + $0x778] sm:$0xff]
    %v1151 = vld [vmem:[#allocation10 + $0x780] sm:$0xff]
    %v1152 = vld [vmem:[#allocation10 + $0x788] sm:$0xff]
    %v1153 = vld [vmem:[#allocation10 + $0x790] sm:$0xff]
    %v1154 = vld [vmem:[#allocation10 + $0x798] sm:$0xff]
    %v1155 = vld [vmem:[#allocation10 + $0x7a0] sm:$0xff]
    %v1156 = vld [vmem:[#allocation10 + $0x7a8] sm:$0xff]
    %v1157 = vld [vmem:[#allocation10 + $0x7b0] sm:$0xff]
    %v1158 = vld [vmem:[#allocation10 + $0x7b8] sm:$0xff]
    %v1159 = vld [vmem:[#allocation10 + $0x7c0] sm:$0xff]
    %v1160 = vld [vmem:[#allocation10 + $0x7c8] sm:$0xff]
    %v1161 = vld [vmem:[#allocation10 + $0x7d0] sm:$0xff]
    %v1162 = vld [vmem:[#allocation10 + $0x7d8] sm:$0xff]
    %v1163 = vld [vmem:[#allocation10 + $0x7e0] sm:$0xff]
    %v1164 = vld [vmem:[#allocation10 + $0x7e8] sm:$0xff]
    %v1165 = vld [vmem:[#allocation10 + $0x7f0] sm:$0xff]
    %v1166 = vld [vmem:[#allocation10 + $0x7f8] sm:$0xff]
    %v1167 = vld [vmem:[#allocation10 + $0x800] sm:$0xff]
    %v1168 = vld [vmem:[#allocation10 + $0x808] sm:$0xff]
    %v1169 = vld [vmem:[#allocation10 + $0x810] sm:$0xff]
    %v1170 = vld [vmem:[#allocation10 + $0x818] sm:$0xff]
    %v1171 = vld [vmem:[#allocation10 + $0x820] sm:$0xff]
    %v1172 = vld [vmem:[#allocation10 + $0x828] sm:$0xff]
    %v1173 = vld [vmem:[#allocation10 + $0x830] sm:$0xff]
    %v1174 = vld [vmem:[#allocation10 + $0x838] sm:$0xff]
    %v1175 = vld [vmem:[#allocation10 + $0x840] sm:$0xff]
    %v1176 = vld [vmem:[#allocation10 + $0x848] sm:$0xff]
    %v1177 = vld [vmem:[#allocation10 + $0x850] sm:$0xff]
    %v1178 = vld [vmem:[#allocation10 + $0x858] sm:$0xff]
    %v1179 = vld [vmem:[#allocation10 + $0x860] sm:$0xff]
    %v1180 = vld [vmem:[#allocation10 + $0x868] sm:$0xff]
    %v1181 = vld [vmem:[#allocation10 + $0x870] sm:$0xff]
    %v1182 = vld [vmem:[#allocation10 + $0x878] sm:$0xff]
    %v1183 = vld [vmem:[#allocation10 + $0x880] sm:$0xff]
    %v1184 = vld [vmem:[#allocation10 + $0x888] sm:$0xff]
    %v1185 = vld [vmem:[#allocation10 + $0x890] sm:$0xff]
    %v1186 = vld [vmem:[#allocation10 + $0x898] sm:$0xff]
    %v1187 = vld [vmem:[#allocation10 + $0x8a0] sm:$0xff]
    %v1188 = vld [vmem:[#allocation10 + $0x8a8] sm:$0xff]
    %v1189 = vld [vmem:[#allocation10 + $0x8b0] sm:$0xff]
    %v1190 = vld [vmem:[#allocation10 + $0x8b8] sm:$0xff]
    %v1191 = vld [vmem:[#allocation10 + $0x8c0] sm:$0xff]
    %v1192 = vld [vmem:[#allocation10 + $0x8c8] sm:$0xff]
    %v1193 = vld [vmem:[#allocation10 + $0x8d0] sm:$0xff]
    %v1194 = vld [vmem:[#allocation10 + $0x8d8] sm:$0xff]
    %v1195 = vld [vmem:[#allocation10 + $0x8e0] sm:$0xff]
    %v1196 = vld [vmem:[#allocation10 + $0x8e8] sm:$0xff]
    %v1197 = vld [vmem:[#allocation10 + $0x8f0] sm:$0xff]
    %v1198 = vld [vmem:[#allocation10 + $0x8f8] sm:$0xff]
    %v1199 = vld [vmem:[#allocation10 + $0x900] sm:$0xff]
    %v1200 = vld [vmem:[#allocation10 + $0x908] sm:$0xff]
    %v1201 = vld [vmem:[#allocation10 + $0x910] sm:$0xff]
    %v1202 = vld [vmem:[#allocation10 + $0x918] sm:$0xff]
    %v1203 = vld [vmem:[#allocation10 + $0x920] sm:$0xff]
    %v1204 = vld [vmem:[#allocation10 + $0x928] sm:$0xff]
    %v1205 = vld [vmem:[#allocation10 + $0x930] sm:$0xff]
    %v1206 = vld [vmem:[#allocation10 + $0x938] sm:$0xff]
    %v1207 = vld [vmem:[#allocation10 + $0x940] sm:$0xff]
    %v1208 = vld [vmem:[#allocation10 + $0x948] sm:$0xff]
    %v1209 = vld [vmem:[#allocation10 + $0x950] sm:$0xff]
    %v1210 = vld [vmem:[#allocation10 + $0x958] sm:$0xff]
    %v1211 = vld [vmem:[#allocation10 + $0x960] sm:$0xff]
    %v1212 = vld [vmem:[#allocation10 + $0x968] sm:$0xff]
    %v1213 = vld [vmem:[#allocation10 + $0x970] sm:$0xff]
    %v1214 = vld [vmem:[#allocation10 + $0x978] sm:$0xff]
    %v1215 = vld [vmem:[#allocation10 + $0x980] sm:$0xff]
    %v1216 = vld [vmem:[#allocation10 + $0x988] sm:$0xff]
    %v1217 = vld [vmem:[#allocation10 + $0x990] sm:$0xff]
    %v1218 = vld [vmem:[#allocation10 + $0x998] sm:$0xff]
    %v1219 = vld [vmem:[#allocation10 + $0x9a0] sm:$0xff]
    %v1220 = vld [vmem:[#allocation10 + $0x9a8] sm:$0xff]
    %v1221 = vld [vmem:[#allocation10 + $0x9b0] sm:$0xff]
    %v1222 = vld [vmem:[#allocation10 + $0x9b8] sm:$0xff]
    %v1223 = vld [vmem:[#allocation10 + $0x9c0] sm:$0xff]
    %v1224 = vld [vmem:[#allocation10 + $0x9c8] sm:$0xff]
    %v1225 = vld [vmem:[#allocation10 + $0x9d0] sm:$0xff]
    %v1226 = vld [vmem:[#allocation10 + $0x9d8] sm:$0xff]
    %v1227 = vld [vmem:[#allocation10 + $0x9e0] sm:$0xff]
    %v1228 = vld [vmem:[#allocation10 + $0x9e8] sm:$0xff]
    %v1229 = vld [vmem:[#allocation10 + $0x9f0] sm:$0xff]
    %v1230 = vld [vmem:[#allocation10 + $0x9f8] sm:$0xff]
    %v1231 = vld [vmem:[#allocation10 + $0xa00] sm:$0xff]
    %v1232 = vld [vmem:[#allocation10 + $0xa08] sm:$0xff]
    %v1233 = vld [vmem:[#allocation10 + $0xa10] sm:$0xff]
    %v1234 = vld [vmem:[#allocation10 + $0xa18] sm:$0xff]
    %v1235 = vld [vmem:[#allocation10 + $0xa20] sm:$0xff]
    %v1236 = vld [vmem:[#allocation10 + $0xa28] sm:$0xff]
    %v1237 = vld [vmem:[#allocation10 + $0xa30] sm:$0xff]
    %v1238 = vld [vmem:[#allocation10 + $0xa38] sm:$0xff]
    %v1239 = vld [vmem:[#allocation10 + $0xa40] sm:$0xff]
    %v1240 = vld [vmem:[#allocation10 + $0xa48] sm:$0xff]
    %v1241 = vld [vmem:[#allocation10 + $0xa50] sm:$0xff]
    %v1242 = vld [vmem:[#allocation10 + $0xa58] sm:$0xff]
    %v1243 = vld [vmem:[#allocation10 + $0xa60] sm:$0xff]
    %v1244 = vld [vmem:[#allocation10 + $0xa68] sm:$0xff]
    %v1245 = vld [vmem:[#allocation10 + $0xa70] sm:$0xff]
    %v1246 = vld [vmem:[#allocation10 + $0xa78] sm:$0xff]
    %v1247 = vld [vmem:[#allocation10 + $0xa80] sm:$0xff]
    %v1248 = vld [vmem:[#allocation10 + $0xa88] sm:$0xff]
    %v1249 = vld [vmem:[#allocation10 + $0xa90] sm:$0xff]
    %v1250 = vld [vmem:[#allocation10 + $0xa98] sm:$0xff]
    %v1251 = vld [vmem:[#allocation10 + $0xaa0] sm:$0xff]
    %v1252 = vld [vmem:[#allocation10 + $0xaa8] sm:$0xff]
    %v1253 = vld [vmem:[#allocation10 + $0xab0] sm:$0xff]
    %v1254 = vld [vmem:[#allocation10 + $0xab8] sm:$0xff]
    %v1255 = vld [vmem:[#allocation10 + $0xac0] sm:$0xff]
    %v1256 = vld [vmem:[#allocation10 + $0xac8] sm:$0xff]
    %v1257 = vld [vmem:[#allocation10 + $0xad0] sm:$0xff]
    %v1258 = vld [vmem:[#allocation10 + $0xad8] sm:$0xff]
    %v1259 = vld [vmem:[#allocation10 + $0xae0] sm:$0xff]
    %v1260 = vld [vmem:[#allocation10 + $0xae8] sm:$0xff]
    %v1261 = vld [vmem:[#allocation10 + $0xaf0] sm:$0xff]
    %v1262 = vld [vmem:[#allocation10 + $0xaf8] sm:$0xff]
    %v1263 = vld [vmem:[#allocation10 + $0xb00] sm:$0xff]
    %v1264 = vld [vmem:[#allocation10 + $0xb08] sm:$0xff]
    %v1265 = vld [vmem:[#allocation10 + $0xb10] sm:$0xff]
    %v1266 = vld [vmem:[#allocation10 + $0xb18] sm:$0xff]
    %v1267 = vld [vmem:[#allocation10 + $0xb20] sm:$0xff]
    %v1268 = vld [vmem:[#allocation10 + $0xb28] sm:$0xff]
    %v1269 = vld [vmem:[#allocation10 + $0xb30] sm:$0xff]
    %v1270 = vld [vmem:[#allocation10 + $0xb38] sm:$0xff]
    %v1271 = vld [vmem:[#allocation10 + $0xb40] sm:$0xff]
    %v1272 = vld [vmem:[#allocation10 + $0xb48] sm:$0xff]
    %v1273 = vld [vmem:[#allocation10 + $0xb50] sm:$0xff]
    %v1274 = vld [vmem:[#allocation10 + $0xb58] sm:$0xff]
    %v1275 = vld [vmem:[#allocation10 + $0xb60] sm:$0xff]
    %v1276 = vld [vmem:[#allocation10 + $0xb68] sm:$0xff]
    %v1277 = vld [vmem:[#allocation10 + $0xb70] sm:$0xff]
    %v1278 = vld [vmem:[#allocation10 + $0xb78] sm:$0xff]
    %v1279 = vld [vmem:[#allocation10 + $0xb80] sm:$0xff]
    %v1280 = vld [vmem:[#allocation10 + $0xb88] sm:$0xff]
    %v1281 = vld [vmem:[#allocation10 + $0xb90] sm:$0xff]
    %v1282 = vld [vmem:[#allocation10 + $0xb98] sm:$0xff]
    %v1283 = vld [vmem:[#allocation10 + $0xba0] sm:$0xff]
    %v1284 = vld [vmem:[#allocation10 + $0xba8] sm:$0xff]
    %v1285 = vld [vmem:[#allocation10 + $0xbb0] sm:$0xff]
    %v1286 = vld [vmem:[#allocation10 + $0xbb8] sm:$0xff]
    %v1287 = vld [vmem:[#allocation10 + $0xbc0] sm:$0xff]
    %v1288 = vld [vmem:[#allocation10 + $0xbc8] sm:$0xff]
    %v1289 = vld [vmem:[#allocation10 + $0xbd0] sm:$0xff]
    %v1290 = vld [vmem:[#allocation10 + $0xbd8] sm:$0xff]
    %v1291 = vld [vmem:[#allocation10 + $0xbe0] sm:$0xff]
    %v1292 = vld [vmem:[#allocation10 + $0xbe8] sm:$0xff]
    %v1293 = vld [vmem:[#allocation10 + $0xbf0] sm:$0xff]
    %v1294 = vld [vmem:[#allocation10 + $0xbf8] sm:$0xff]
    %v1295 = vld [vmem:[#allocation10 + $0xc00] sm:$0xff]
    %v1296 = vld [vmem:[#allocation10 + $0xc08] sm:$0xff]
    %v1297 = vld [vmem:[#allocation10 + $0xc10] sm:$0xff]
    %v1298 = vld [vmem:[#allocation10 + $0xc18] sm:$0xff]
    %v1299 = vld [vmem:[#allocation10 + $0xc20] sm:$0xff]
    %v1300 = vld [vmem:[#allocation10 + $0xc28] sm:$0xff]
    %v1301 = vld [vmem:[#allocation10 + $0xc30] sm:$0xff]
    %v1302 = vld [vmem:[#allocation10 + $0xc38] sm:$0xff]
    %v1303 = vld [vmem:[#allocation10 + $0xc40] sm:$0xff]
    %v1304 = vld [vmem:[#allocation10 + $0xc48] sm:$0xff]
    %v1305 = vld [vmem:[#allocation10 + $0xc50] sm:$0xff]
    %v1306 = vld [vmem:[#allocation10 + $0xc58] sm:$0xff]
    %v1307 = vld [vmem:[#allocation10 + $0xc60] sm:$0xff]
    %v1308 = vld [vmem:[#allocation10 + $0xc68] sm:$0xff]
    %v1309 = vld [vmem:[#allocation10 + $0xc70] sm:$0xff]
    %v1310 = vld [vmem:[#allocation10 + $0xc78] sm:$0xff]
    %v1311 = vld [vmem:[#allocation10 + $0xc80] sm:$0xff]
    %v1312 = vld [vmem:[#allocation10 + $0xc88] sm:$0xff]
    %v1313 = vld [vmem:[#allocation10 + $0xc90] sm:$0xff]
    %v1314 = vld [vmem:[#allocation10 + $0xc98] sm:$0xff]
    %v1315 = vld [vmem:[#allocation10 + $0xca0] sm:$0xff]
    %v1316 = vld [vmem:[#allocation10 + $0xca8] sm:$0xff]
    %v1317 = vld [vmem:[#allocation10 + $0xcb0] sm:$0xff]
    %v1318 = vld [vmem:[#allocation10 + $0xcb8] sm:$0xff]
    %v1319 = vld [vmem:[#allocation10 + $0xcc0] sm:$0xff]
    %v1320 = vld [vmem:[#allocation10 + $0xcc8] sm:$0xff]
    %v1321 = vld [vmem:[#allocation10 + $0xcd0] sm:$0xff]
    %v1322 = vld [vmem:[#allocation10 + $0xcd8] sm:$0xff]
    %v1323 = vld [vmem:[#allocation10 + $0xce0] sm:$0xff]
    %v1324 = vld [vmem:[#allocation10 + $0xce8] sm:$0xff]
    %v1325 = vld [vmem:[#allocation10 + $0xcf0] sm:$0xff]
    %v1326 = vld [vmem:[#allocation10 + $0xcf8] sm:$0xff]
    %v1327 = vld [vmem:[#allocation10 + $0xd00] sm:$0xff]
    %v1328 = vld [vmem:[#allocation10 + $0xd08] sm:$0xff]
    %v1329 = vld [vmem:[#allocation10 + $0xd10] sm:$0xff]
    %v1330 = vld [vmem:[#allocation10 + $0xd18] sm:$0xff]
    %v1331 = vld [vmem:[#allocation10 + $0xd20] sm:$0xff]
    %v1332 = vld [vmem:[#allocation10 + $0xd28] sm:$0xff]
    %v1333 = vld [vmem:[#allocation10 + $0xd30] sm:$0xff]
    %v1334 = vld [vmem:[#allocation10 + $0xd38] sm:$0xff]
    %v1335 = vld [vmem:[#allocation10 + $0xd40] sm:$0xff]
    %v1336 = vld [vmem:[#allocation10 + $0xd48] sm:$0xff]
    %v1337 = vld [vmem:[#allocation10 + $0xd50] sm:$0xff]
    %v1338 = vld [vmem:[#allocation10 + $0xd58] sm:$0xff]
    %v1339 = vld [vmem:[#allocation10 + $0xd60] sm:$0xff]
    %v1340 = vld [vmem:[#allocation10 + $0xd68] sm:$0xff]
    %v1341 = vld [vmem:[#allocation10 + $0xd70] sm:$0xff]
    %v1342 = vld [vmem:[#allocation10 + $0xd78] sm:$0xff]
    %v1343 = vld [vmem:[#allocation10 + $0xd80] sm:$0xff]
    %v1344 = vld [vmem:[#allocation10 + $0xd88] sm:$0xff]
    %v1345 = vld [vmem:[#allocation10 + $0xd90] sm:$0xff]
    %v1346 = vld [vmem:[#allocation10 + $0xd98] sm:$0xff]
    %v1347 = vld [vmem:[#allocation10 + $0xda0] sm:$0xff]
    %v1348 = vld [vmem:[#allocation10 + $0xda8] sm:$0xff]
    %v1349 = vld [vmem:[#allocation10 + $0xdb0] sm:$0xff]
    %v1350 = vld [vmem:[#allocation10 + $0xdb8] sm:$0xff]
    %v1351 = vld [vmem:[#allocation10 + $0xdc0] sm:$0xff]
    %v1352 = vld [vmem:[#allocation10 + $0xdc8] sm:$0xff]
    %v1353 = vld [vmem:[#allocation10 + $0xdd0] sm:$0xff]
    %v1354 = vld [vmem:[#allocation10 + $0xdd8] sm:$0xff]
    %v1355 = vld [vmem:[#allocation10 + $0xde0] sm:$0xff]
    %v1356 = vld [vmem:[#allocation10 + $0xde8] sm:$0xff]
    %v1357 = vld [vmem:[#allocation10 + $0xdf0] sm:$0xff]
    %v1358 = vld [vmem:[#allocation10 + $0xdf8] sm:$0xff]
    %v1359 = vld [vmem:[#allocation10 + $0xe00] sm:$0xff]
    %v1360 = vld [vmem:[#allocation10 + $0xe08] sm:$0xff]
    %v1361 = vld [vmem:[#allocation10 + $0xe10] sm:$0xff]
    %v1362 = vld [vmem:[#allocation10 + $0xe18] sm:$0xff]
    %v1363 = vld [vmem:[#allocation10 + $0xe20] sm:$0xff]
    %v1364 = vld [vmem:[#allocation10 + $0xe28] sm:$0xff]
    %v1365 = vld [vmem:[#allocation10 + $0xe30] sm:$0xff]
    %v1366 = vld [vmem:[#allocation10 + $0xe38] sm:$0xff]
    %v1367 = vld [vmem:[#allocation10 + $0xe40] sm:$0xff]
    %v1368 = vld [vmem:[#allocation10 + $0xe48] sm:$0xff]
    %v1369 = vld [vmem:[#allocation10 + $0xe50] sm:$0xff]
    %v1370 = vld [vmem:[#allocation10 + $0xe58] sm:$0xff]
    %v1371 = vld [vmem:[#allocation10 + $0xe60] sm:$0xff]
    %v1372 = vld [vmem:[#allocation10 + $0xe68] sm:$0xff]
    %v1373 = vld [vmem:[#allocation10 + $0xe70] sm:$0xff]
    %v1374 = vld [vmem:[#allocation10 + $0xe78] sm:$0xff]
    %v1375 = vld [vmem:[#allocation10 + $0xe80] sm:$0xff]
    %v1376 = vld [vmem:[#allocation10 + $0xe88] sm:$0xff]
    %v1377 = vld [vmem:[#allocation10 + $0xe90] sm:$0xff]
    %v1378 = vld [vmem:[#allocation10 + $0xe98] sm:$0xff]
    %v1379 = vld [vmem:[#allocation10 + $0xea0] sm:$0xff]
    %v1380 = vld [vmem:[#allocation10 + $0xea8] sm:$0xff]
    %v1381 = vld [vmem:[#allocation10 + $0xeb0] sm:$0xff]
    %v1382 = vld [vmem:[#allocation10 + $0xeb8] sm:$0xff]
    %v1383 = vld [vmem:[#allocation10 + $0xec0] sm:$0xff]
    %v1384 = vld [vmem:[#allocation10 + $0xec8] sm:$0xff]
    %v1385 = vld [vmem:[#allocation10 + $0xed0] sm:$0xff]
    %v1386 = vld [vmem:[#allocation10 + $0xed8] sm:$0xff]
    %v1387 = vld [vmem:[#allocation10 + $0xee0] sm:$0xff]
    %v1388 = vld [vmem:[#allocation10 + $0xee8] sm:$0xff]
    %v1389 = vld [vmem:[#allocation10 + $0xef0] sm:$0xff]
    %v1390 = vld [vmem:[#allocation10 + $0xef8] sm:$0xff]
    %v1391 = vld [vmem:[#allocation10 + $0xf00] sm:$0xff]
    %v1392 = vld [vmem:[#allocation10 + $0xf08] sm:$0xff]
    %v1393 = vld [vmem:[#allocation10 + $0xf10] sm:$0xff]
    %v1394 = vld [vmem:[#allocation10 + $0xf18] sm:$0xff]
    %v1395 = vld [vmem:[#allocation10 + $0xf20] sm:$0xff]
    %v1396 = vld [vmem:[#allocation10 + $0xf28] sm:$0xff]
    %v1397 = vld [vmem:[#allocation10 + $0xf30] sm:$0xff]
    %v1398 = vld [vmem:[#allocation10 + $0xf38] sm:$0xff]
    %v1399 = vld [vmem:[#allocation10 + $0xf40] sm:$0xff]
    %v1400 = vld [vmem:[#allocation10 + $0xf48] sm:$0xff]
    %v1401 = vld [vmem:[#allocation10 + $0xf50] sm:$0xff]
    %v1402 = vld [vmem:[#allocation10 + $0xf58] sm:$0xff]
    %v1403 = vld [vmem:[#allocation10 + $0xf60] sm:$0xff]
    %v1404 = vld [vmem:[#allocation10 + $0xf68] sm:$0xff]
    %v1405 = vld [vmem:[#allocation10 + $0xf70] sm:$0xff]
    %v1406 = vld [vmem:[#allocation10 + $0xf78] sm:$0xff]
    %v1407 = vld [vmem:[#allocation10 + $0xf80] sm:$0xff]
    %v1408 = vld [vmem:[#allocation10 + $0xf88] sm:$0xff]
    %v1409 = vld [vmem:[#allocation10 + $0xf90] sm:$0xff]
    %v1410 = vld [vmem:[#allocation10 + $0xf98] sm:$0xff]
    %v1411 = vld [vmem:[#allocation10 + $0xfa0] sm:$0xff]
    %v1412 = vld [vmem:[#allocation10 + $0xfa8] sm:$0xff]
    %v1413 = vld [vmem:[#allocation10 + $0xfb0] sm:$0xff]
    %v1414 = vld [vmem:[#allocation10 + $0xfb8] sm:$0xff]
    %v1415 = vld [vmem:[#allocation10 + $0xfc0] sm:$0xff]
    %v1416 = vld [vmem:[#allocation10 + $0xfc8] sm:$0xff]
    %v1417 = vld [vmem:[#allocation10 + $0xfd0] sm:$0xff]
    %v1418 = vld [vmem:[#allocation10 + $0xfd8] sm:$0xff]
    %v1419 = vld [vmem:[#allocation10 + $0xfe0] sm:$0xff]
    %v1420 = vld [vmem:[#allocation10 + $0xfe8] sm:$0xff]
    %v1421 = vld [vmem:[#allocation10 + $0xff0] sm:$0xff]
    %v1422 = vld [vmem:[#allocation10 + $0xff8] sm:$0xff]
    %1423 = vmatpush.msra.mxu0 %v971
    %1424 = vmatpush.msra.mxu0 %v967
    %1425 = vmatpush.msra.mxu0 %v963
    %1426 = vmatpush.msra.mxu0 %v959
    %1427 = vmatpush.msra.mxu0 %v955
    %1428 = vmatpush.msra.mxu0 %v951
    %1429 = vmatpush.msra.mxu0 %v947
    %1430 = vmatpush.msra.mxu0 %v943
    %1431 = vmatpush.msra.mxu0 %v939
    %1432 = vmatpush.msra.mxu0 %v935
    %1433 = vmatpush.msra.mxu0 %v931
    %1434 = vmatpush.msra.mxu0 %v927
    %1435 = vmatpush.msra.mxu0 %v923
    %1436 = vmatpush.msra.mxu0 %v919
    %1437 = vmatpush.msra.mxu0 %v915
    %1438 = vmatpush.msra.mxu0 %v911
    %1439 = vmatmul.f32.gmra.mxu0 %v903
    %v1440 = vpop.f32.mrf.mxu0
    %v1441 = vadd.f32 0.0, %v1440
    %1442 = vdwg.mxu0
    %1443 = vmatpush.msra.mxu0 %v1035
    %1444 = vmatpush.msra.mxu0 %v1031
    %1445 = vmatpush.msra.mxu0 %v1027
    %1446 = vmatpush.msra.mxu0 %v1023
    %1447 = vmatpush.msra.mxu0 %v1019
    %1448 = vmatpush.msra.mxu0 %v1015
    %1449 = vmatpush.msra.mxu0 %v1011
    %1450 = vmatpush.msra.mxu0 %v1007
    %1451 = vmatpush.msra.mxu0 %v1003
    %1452 = vmatpush.msra.mxu0 %v999
    %1453 = vmatpush.msra.mxu0 %v995
    %1454 = vmatpush.msra.mxu0 %v991
    %1455 = vmatpush.msra.mxu0 %v987
    %1456 = vmatpush.msra.mxu0 %v983
    %1457 = vmatpush.msra.mxu0 %v979
    %1458 = vmatpush.msra.mxu0 %v975
    %1459 = vmatmul.f32.gmra.mxu0 %v904
    %v1460 = vpop.f32.mrf.mxu0
    %v1461 = vadd.f32 %v1441, %v1460
    %1462 = vdwg.mxu0
    %1463 = vmatpush.msra.mxu0 %v1099
    %1464 = vmatpush.msra.mxu0 %v1095
    %1465 = vmatpush.msra.mxu0 %v1091
    %1466 = vmatpush.msra.mxu0 %v1087
    %1467 = vmatpush.msra.mxu0 %v1083
    %1468 = vmatpush.msra.mxu0 %v1079
    %1469 = vmatpush.msra.mxu0 %v1075
    %1470 = vmatpush.msra.mxu0 %v1071
    %1471 = vmatpush.msra.mxu0 %v1067
    %1472 = vmatpush.msra.mxu0 %v1063
    %1473 = vmatpush.msra.mxu0 %v1059
    %1474 = vmatpush.msra.mxu0 %v1055
    %1475 = vmatpush.msra.mxu0 %v1051
    %1476 = vmatpush.msra.mxu0 %v1047
    %1477 = vmatpush.msra.mxu0 %v1043
    %1478 = vmatpush.msra.mxu0 %v1039
    %1479 = vmatmul.f32.gmra.mxu0 %v905
    %v1480 = vpop.f32.mrf.mxu0
    %v1481 = vadd.f32 %v1461, %v1480
    %1482 = vdwg.mxu0
    %1483 = vmatpush.msra.mxu0 %v1163
    %1484 = vmatpush.msra.mxu0 %v1159
    %1485 = vmatpush.msra.mxu0 %v1155
    %1486 = vmatpush.msra.mxu0 %v1151
    %1487 = vmatpush.msra.mxu0 %v1147
    %1488 = vmatpush.msra.mxu0 %v1143
    %1489 = vmatpush.msra.mxu0 %v1139
    %1490 = vmatpush.msra.mxu0 %v1135
    %1491 = vmatpush.msra.mxu0 %v1131
    %1492 = vmatpush.msra.mxu0 %v1127
    %1493 = vmatpush.msra.mxu0 %v1123
    %1494 = vmatpush.msra.mxu0 %v1119
    %1495 = vmatpush.msra.mxu0 %v1115
    %1496 = vmatpush.msra.mxu0 %v1111
    %1497 = vmatpush.msra.mxu0 %v1107
    %1498 = vmatpush.msra.mxu0 %v1103
    %1499 = vmatmul.f32.gmra.mxu0 %v906
    %v1500 = vpop.f32.mrf.mxu0
    %v1501 = vadd.f32 %v1481, %v1500
    %1502 = vdwg.mxu0
    %1503 = vmatpush.msra.mxu0 %v1227
    %1504 = vmatpush.msra.mxu0 %v1223
    %1505 = vmatpush.msra.mxu0 %v1219
    %1506 = vmatpush.msra.mxu0 %v1215
    %1507 = vmatpush.msra.mxu0 %v1211
    %1508 = vmatpush.msra.mxu0 %v1207
    %1509 = vmatpush.msra.mxu0 %v1203
    %1510 = vmatpush.msra.mxu0 %v1199
    %1511 = vmatpush.msra.mxu0 %v1195
    %1512 = vmatpush.msra.mxu0 %v1191
    %1513 = vmatpush.msra.mxu0 %v1187
    %1514 = vmatpush.msra.mxu0 %v1183
    %1515 = vmatpush.msra.mxu0 %v1179
    %1516 = vmatpush.msra.mxu0 %v1175
    %1517 = vmatpush.msra.mxu0 %v1171
    %1518 = vmatpush.msra.mxu0 %v1167
    %1519 = vmatmul.f32.gmra.mxu0 %v907
    %v1520 = vpop.f32.mrf.mxu0
    %v1521 = vadd.f32 %v1501, %v1520
    %1522 = vdwg.mxu0
    %1523 = vmatpush.msra.mxu0 %v1291
    %1524 = vmatpush.msra.mxu0 %v1287
    %1525 = vmatpush.msra.mxu0 %v1283
    %1526 = vmatpush.msra.mxu0 %v1279
    %1527 = vmatpush.msra.mxu0 %v1275
    %1528 = vmatpush.msra.mxu0 %v1271
    %1529 = vmatpush.msra.mxu0 %v1267
    %1530 = vmatpush.msra.mxu0 %v1263
    %1531 = vmatpush.msra.mxu0 %v1259
    %1532 = vmatpush.msra.mxu0 %v1255
    %1533 = vmatpush.msra.mxu0 %v1251
    %1534 = vmatpush.msra.mxu0 %v1247
    %1535 = vmatpush.msra.mxu0 %v1243
    %1536 = vmatpush.msra.mxu0 %v1239
    %1537 = vmatpush.msra.mxu0 %v1235
    %1538 = vmatpush.msra.mxu0 %v1231
    %1539 = vmatmul.f32.gmra.mxu0 %v908
    %v1540 = vpop.f32.mrf.mxu0
    %v1541 = vadd.f32 %v1521, %v1540
    %1542 = vdwg.mxu0
    %1543 = vmatpush.msra.mxu0 %v1355
    %1544 = vmatpush.msra.mxu0 %v1351
    %1545 = vmatpush.msra.mxu0 %v1347
    %1546 = vmatpush.msra.mxu0 %v1343
    %1547 = vmatpush.msra.mxu0 %v1339
    %1548 = vmatpush.msra.mxu0 %v1335
    %1549 = vmatpush.msra.mxu0 %v1331
    %1550 = vmatpush.msra.mxu0 %v1327
    %1551 = vmatpush.msra.mxu0 %v1323
    %1552 = vmatpush.msra.mxu0 %v1319
    %1553 = vmatpush.msra.mxu0 %v1315
    %1554 = vmatpush.msra.mxu0 %v1311
    %1555 = vmatpush.msra.mxu0 %v1307
    %1556 = vmatpush.msra.mxu0 %v1303
    %1557 = vmatpush.msra.mxu0 %v1299
    %1558 = vmatpush.msra.mxu0 %v1295
    %1559 = vmatmul.f32.gmra.mxu0 %v909
    %v1560 = vpop.f32.mrf.mxu0
    %v1561 = vadd.f32 %v1541, %v1560
    %1562 = vdwg.mxu0
    %1563 = vmatpush.msra.mxu0 %v1419
    %1564 = vmatpush.msra.mxu0 %v1415
    %1565 = vmatpush.msra.mxu0 %v1411
    %1566 = vmatpush.msra.mxu0 %v1407
    %1567 = vmatpush.msra.mxu0 %v1403
    %1568 = vmatpush.msra.mxu0 %v1399
    %1569 = vmatpush.msra.mxu0 %v1395
    %1570 = vmatpush.msra.mxu0 %v1391
    %1571 = vmatpush.msra.mxu0 %v1387
    %1572 = vmatpush.msra.mxu0 %v1383
    %1573 = vmatpush.msra.mxu0 %v1379
    %1574 = vmatpush.msra.mxu0 %v1375
    %1575 = vmatpush.msra.mxu0 %v1371
    %1576 = vmatpush.msra.mxu0 %v1367
    %1577 = vmatpush.msra.mxu0 %v1363
    %1578 = vmatpush.msra.mxu0 %v1359
    %1579 = vmatmul.f32.gmra.mxu0 %v910
    %v1580 = vpop.f32.mrf.mxu0
    %v1581 = vadd.f32 %v1561, %v1580
    %1582 = vdwg.mxu0
    %1583 = vmatpush.msra.mxu0 %v972
    %1584 = vmatpush.msra.mxu0 %v968
    %1585 = vmatpush.msra.mxu0 %v964
    %1586 = vmatpush.msra.mxu0 %v960
    %1587 = vmatpush.msra.mxu0 %v956
    %1588 = vmatpush.msra.mxu0 %v952
    %1589 = vmatpush.msra.mxu0 %v948
    %1590 = vmatpush.msra.mxu0 %v944
    %1591 = vmatpush.msra.mxu0 %v940
    %1592 = vmatpush.msra.mxu0 %v936
    %1593 = vmatpush.msra.mxu0 %v932
    %1594 = vmatpush.msra.mxu0 %v928
    %1595 = vmatpush.msra.mxu0 %v924
    %1596 = vmatpush.msra.mxu0 %v920
    %1597 = vmatpush.msra.mxu0 %v916
    %1598 = vmatpush.msra.mxu0 %v912
    %1599 = vmatmul.f32.gmra.mxu0 %v903
    %v1600 = vpop.f32.mrf.mxu0
    %v1601 = vadd.f32 0.0, %v1600
    %1602 = vdwg.mxu0
    %1603 = vmatpush.msra.mxu0 %v1036
    %1604 = vmatpush.msra.mxu0 %v1032
    %1605 = vmatpush.msra.mxu0 %v1028
    %1606 = vmatpush.msra.mxu0 %v1024
    %1607 = vmatpush.msra.mxu0 %v1020
    %1608 = vmatpush.msra.mxu0 %v1016
    %1609 = vmatpush.msra.mxu0 %v1012
    %1610 = vmatpush.msra.mxu0 %v1008
    %1611 = vmatpush.msra.mxu0 %v1004
    %1612 = vmatpush.msra.mxu0 %v1000
    %1613 = vmatpush.msra.mxu0 %v996
    %1614 = vmatpush.msra.mxu0 %v992
    %1615 = vmatpush.msra.mxu0 %v988
    %1616 = vmatpush.msra.mxu0 %v984
    %1617 = vmatpush.msra.mxu0 %v980
    %1618 = vmatpush.msra.mxu0 %v976
    %1619 = vmatmul.f32.gmra.mxu0 %v904
    %v1620 = vpop.f32.mrf.mxu0
    %v1621 = vadd.f32 %v1601, %v1620
    %1622 = vdwg.mxu0
    %1623 = vmatpush.msra.mxu0 %v1100
    %1624 = vmatpush.msra.mxu0 %v1096
    %1625 = vmatpush.msra.mxu0 %v1092
    %1626 = vmatpush.msra.mxu0 %v1088
    %1627 = vmatpush.msra.mxu0 %v1084
    %1628 = vmatpush.msra.mxu0 %v1080
    %1629 = vmatpush.msra.mxu0 %v1076
    %1630 = vmatpush.msra.mxu0 %v1072
    %1631 = vmatpush.msra.mxu0 %v1068
    %1632 = vmatpush.msra.mxu0 %v1064
    %1633 = vmatpush.msra.mxu0 %v1060
    %1634 = vmatpush.msra.mxu0 %v1056
    %1635 = vmatpush.msra.mxu0 %v1052
    %1636 = vmatpush.msra.mxu0 %v1048
    %1637 = vmatpush.msra.mxu0 %v1044
    %1638 = vmatpush.msra.mxu0 %v1040
    %1639 = vmatmul.f32.gmra.mxu0 %v905
    %v1640 = vpop.f32.mrf.mxu0
    %v1641 = vadd.f32 %v1621, %v1640
    %1642 = vdwg.mxu0
    %1643 = vmatpush.msra.mxu0 %v1164
    %1644 = vmatpush.msra.mxu0 %v1160
    %1645 = vmatpush.msra.mxu0 %v1156
    %1646 = vmatpush.msra.mxu0 %v1152
    %1647 = vmatpush.msra.mxu0 %v1148
    %1648 = vmatpush.msra.mxu0 %v1144
    %1649 = vmatpush.msra.mxu0 %v1140
    %1650 = vmatpush.msra.mxu0 %v1136
    %1651 = vmatpush.msra.mxu0 %v1132
    %1652 = vmatpush.msra.mxu0 %v1128
    %1653 = vmatpush.msra.mxu0 %v1124
    %1654 = vmatpush.msra.mxu0 %v1120
    %1655 = vmatpush.msra.mxu0 %v1116
    %1656 = vmatpush.msra.mxu0 %v1112
    %1657 = vmatpush.msra.mxu0 %v1108
    %1658 = vmatpush.msra.mxu0 %v1104
    %1659 = vmatmul.f32.gmra.mxu0 %v906
    %v1660 = vpop.f32.mrf.mxu0
    %v1661 = vadd.f32 %v1641, %v1660
    %1662 = vdwg.mxu0
    %1663 = vmatpush.msra.mxu0 %v1228
    %1664 = vmatpush.msra.mxu0 %v1224
    %1665 = vmatpush.msra.mxu0 %v1220
    %1666 = vmatpush.msra.mxu0 %v1216
    %1667 = vmatpush.msra.mxu0 %v1212
    %1668 = vmatpush.msra.mxu0 %v1208
    %1669 = vmatpush.msra.mxu0 %v1204
    %1670 = vmatpush.msra.mxu0 %v1200
    %1671 = vmatpush.msra.mxu0 %v1196
    %1672 = vmatpush.msra.mxu0 %v1192
    %1673 = vmatpush.msra.mxu0 %v1188
    %1674 = vmatpush.msra.mxu0 %v1184
    %1675 = vmatpush.msra.mxu0 %v1180
    %1676 = vmatpush.msra.mxu0 %v1176
    %1677 = vmatpush.msra.mxu0 %v1172
    %1678 = vmatpush.msra.mxu0 %v1168
    %1679 = vmatmul.f32.gmra.mxu0 %v907
    %v1680 = vpop.f32.mrf.mxu0
    %v1681 = vadd.f32 %v1661, %v1680
    %1682 = vdwg.mxu0
    %1683 = vmatpush.msra.mxu0 %v1292
    %1684 = vmatpush.msra.mxu0 %v1288
    %1685 = vmatpush.msra.mxu0 %v1284
    %1686 = vmatpush.msra.mxu0 %v1280
    %1687 = vmatpush.msra.mxu0 %v1276
    %1688 = vmatpush.msra.mxu0 %v1272
    %1689 = vmatpush.msra.mxu0 %v1268
    %1690 = vmatpush.msra.mxu0 %v1264
    %1691 = vmatpush.msra.mxu0 %v1260
    %1692 = vmatpush.msra.mxu0 %v1256
    %1693 = vmatpush.msra.mxu0 %v1252
    %1694 = vmatpush.msra.mxu0 %v1248
    %1695 = vmatpush.msra.mxu0 %v1244
    %1696 = vmatpush.msra.mxu0 %v1240
    %1697 = vmatpush.msra.mxu0 %v1236
    %1698 = vmatpush.msra.mxu0 %v1232
    %1699 = vmatmul.f32.gmra.mxu0 %v908
    %v1700 = vpop.f32.mrf.mxu0
    %v1701 = vadd.f32 %v1681, %v1700
    %1702 = vdwg.mxu0
    %1703 = vmatpush.msra.mxu0 %v1356
    %1704 = vmatpush.msra.mxu0 %v1352
    %1705 = vmatpush.msra.mxu0 %v1348
    %1706 = vmatpush.msra.mxu0 %v1344
    %1707 = vmatpush.msra.mxu0 %v1340
    %1708 = vmatpush.msra.mxu0 %v1336
    %1709 = vmatpush.msra.mxu0 %v1332
    %1710 = vmatpush.msra.mxu0 %v1328
    %1711 = vmatpush.msra.mxu0 %v1324
    %1712 = vmatpush.msra.mxu0 %v1320
    %1713 = vmatpush.msra.mxu0 %v1316
    %1714 = vmatpush.msra.mxu0 %v1312
    %1715 = vmatpush.msra.mxu0 %v1308
    %1716 = vmatpush.msra.mxu0 %v1304
    %1717 = vmatpush.msra.mxu0 %v1300
    %1718 = vmatpush.msra.mxu0 %v1296
    %1719 = vmatmul.f32.gmra.mxu0 %v909
    %v1720 = vpop.f32.mrf.mxu0
    %v1721 = vadd.f32 %v1701, %v1720
    %1722 = vdwg.mxu0
    %1723 = vmatpush.msra.mxu0 %v1420
    %1724 = vmatpush.msra.mxu0 %v1416
    %1725 = vmatpush.msra.mxu0 %v1412
    %1726 = vmatpush.msra.mxu0 %v1408
    %1727 = vmatpush.msra.mxu0 %v1404
    %1728 = vmatpush.msra.mxu0 %v1400
    %1729 = vmatpush.msra.mxu0 %v1396
    %1730 = vmatpush.msra.mxu0 %v1392
    %1731 = vmatpush.msra.mxu0 %v1388
    %1732 = vmatpush.msra.mxu0 %v1384
    %1733 = vmatpush.msra.mxu0 %v1380
    %1734 = vmatpush.msra.mxu0 %v1376
    %1735 = vmatpush.msra.mxu0 %v1372
    %1736 = vmatpush.msra.mxu0 %v1368
    %1737 = vmatpush.msra.mxu0 %v1364
    %1738 = vmatpush.msra.mxu0 %v1360
    %1739 = vmatmul.f32.gmra.mxu0 %v910
    %v1740 = vpop.f32.mrf.mxu0
    %v1741 = vadd.f32 %v1721, %v1740
    %1742 = vdwg.mxu0
    %1743 = vmatpush.msra.mxu0 %v973
    %1744 = vmatpush.msra.mxu0 %v969
    %1745 = vmatpush.msra.mxu0 %v965
    %1746 = vmatpush.msra.mxu0 %v961
    %1747 = vmatpush.msra.mxu0 %v957
    %1748 = vmatpush.msra.mxu0 %v953
    %1749 = vmatpush.msra.mxu0 %v949
    %1750 = vmatpush.msra.mxu0 %v945
    %1751 = vmatpush.msra.mxu0 %v941
    %1752 = vmatpush.msra.mxu0 %v937
    %1753 = vmatpush.msra.mxu0 %v933
    %1754 = vmatpush.msra.mxu0 %v929
    %1755 = vmatpush.msra.mxu0 %v925
    %1756 = vmatpush.msra.mxu0 %v921
    %1757 = vmatpush.msra.mxu0 %v917
    %1758 = vmatpush.msra.mxu0 %v913
    %1759 = vmatmul.f32.gmra.mxu0 %v903
    %v1760 = vpop.f32.mrf.mxu0
    %v1761 = vadd.f32 0.0, %v1760
    %1762 = vdwg.mxu0
    %1763 = vmatpush.msra.mxu0 %v1037
    %1764 = vmatpush.msra.mxu0 %v1033
    %1765 = vmatpush.msra.mxu0 %v1029
    %1766 = vmatpush.msra.mxu0 %v1025
    %1767 = vmatpush.msra.mxu0 %v1021
    %1768 = vmatpush.msra.mxu0 %v1017
    %1769 = vmatpush.msra.mxu0 %v1013
    %1770 = vmatpush.msra.mxu0 %v1009
    %1771 = vmatpush.msra.mxu0 %v1005
    %1772 = vmatpush.msra.mxu0 %v1001
    %1773 = vmatpush.msra.mxu0 %v997
    %1774 = vmatpush.msra.mxu0 %v993
    %1775 = vmatpush.msra.mxu0 %v989
    %1776 = vmatpush.msra.mxu0 %v985
    %1777 = vmatpush.msra.mxu0 %v981
    %1778 = vmatpush.msra.mxu0 %v977
    %1779 = vmatmul.f32.gmra.mxu0 %v904
    %v1780 = vpop.f32.mrf.mxu0
    %v1781 = vadd.f32 %v1761, %v1780
    %1782 = vdwg.mxu0
    %1783 = vmatpush.msra.mxu0 %v1101
    %1784 = vmatpush.msra.mxu0 %v1097
    %1785 = vmatpush.msra.mxu0 %v1093
    %1786 = vmatpush.msra.mxu0 %v1089
    %1787 = vmatpush.msra.mxu0 %v1085
    %1788 = vmatpush.msra.mxu0 %v1081
    %1789 = vmatpush.msra.mxu0 %v1077
    %1790 = vmatpush.msra.mxu0 %v1073
    %1791 = vmatpush.msra.mxu0 %v1069
    %1792 = vmatpush.msra.mxu0 %v1065
    %1793 = vmatpush.msra.mxu0 %v1061
    %1794 = vmatpush.msra.mxu0 %v1057
    %1795 = vmatpush.msra.mxu0 %v1053
    %1796 = vmatpush.msra.mxu0 %v1049
    %1797 = vmatpush.msra.mxu0 %v1045
    %1798 = vmatpush.msra.mxu0 %v1041
    %1799 = vmatmul.f32.gmra.mxu0 %v905
    %v1800 = vpop.f32.mrf.mxu0
    %v1801 = vadd.f32 %v1781, %v1800
    %1802 = vdwg.mxu0
    %1803 = vmatpush.msra.mxu0 %v1165
    %1804 = vmatpush.msra.mxu0 %v1161
    %1805 = vmatpush.msra.mxu0 %v1157
    %1806 = vmatpush.msra.mxu0 %v1153
    %1807 = vmatpush.msra.mxu0 %v1149
    %1808 = vmatpush.msra.mxu0 %v1145
    %1809 = vmatpush.msra.mxu0 %v1141
    %1810 = vmatpush.msra.mxu0 %v1137
    %1811 = vmatpush.msra.mxu0 %v1133
    %1812 = vmatpush.msra.mxu0 %v1129
    %1813 = vmatpush.msra.mxu0 %v1125
    %1814 = vmatpush.msra.mxu0 %v1121
    %1815 = vmatpush.msra.mxu0 %v1117
    %1816 = vmatpush.msra.mxu0 %v1113
    %1817 = vmatpush.msra.mxu0 %v1109
    %1818 = vmatpush.msra.mxu0 %v1105
    %1819 = vmatmul.f32.gmra.mxu0 %v906
    %v1820 = vpop.f32.mrf.mxu0
    %v1821 = vadd.f32 %v1801, %v1820
    %1822 = vdwg.mxu0
    %1823 = vmatpush.msra.mxu0 %v1229
    %1824 = vmatpush.msra.mxu0 %v1225
    %1825 = vmatpush.msra.mxu0 %v1221
    %1826 = vmatpush.msra.mxu0 %v1217
    %1827 = vmatpush.msra.mxu0 %v1213
    %1828 = vmatpush.msra.mxu0 %v1209
    %1829 = vmatpush.msra.mxu0 %v1205
    %1830 = vmatpush.msra.mxu0 %v1201
    %1831 = vmatpush.msra.mxu0 %v1197
    %1832 = vmatpush.msra.mxu0 %v1193
    %1833 = vmatpush.msra.mxu0 %v1189
    %1834 = vmatpush.msra.mxu0 %v1185
    %1835 = vmatpush.msra.mxu0 %v1181
    %1836 = vmatpush.msra.mxu0 %v1177
    %1837 = vmatpush.msra.mxu0 %v1173
    %1838 = vmatpush.msra.mxu0 %v1169
    %1839 = vmatmul.f32.gmra.mxu0 %v907
    %v1840 = vpop.f32.mrf.mxu0
    %v1841 = vadd.f32 %v1821, %v1840
    %1842 = vdwg.mxu0
    %1843 = vmatpush.msra.mxu0 %v1293
    %1844 = vmatpush.msra.mxu0 %v1289
    %1845 = vmatpush.msra.mxu0 %v1285
    %1846 = vmatpush.msra.mxu0 %v1281
    %1847 = vmatpush.msra.mxu0 %v1277
    %1848 = vmatpush.msra.mxu0 %v1273
    %1849 = vmatpush.msra.mxu0 %v1269
    %1850 = vmatpush.msra.mxu0 %v1265
    %1851 = vmatpush.msra.mxu0 %v1261
    %1852 = vmatpush.msra.mxu0 %v1257
    %1853 = vmatpush.msra.mxu0 %v1253
    %1854 = vmatpush.msra.mxu0 %v1249
    %1855 = vmatpush.msra.mxu0 %v1245
    %1856 = vmatpush.msra.mxu0 %v1241
    %1857 = vmatpush.msra.mxu0 %v1237
    %1858 = vmatpush.msra.mxu0 %v1233
    %1859 = vmatmul.f32.gmra.mxu0 %v908
    %v1860 = vpop.f32.mrf.mxu0
    %v1861 = vadd.f32 %v1841, %v1860
    %1862 = vdwg.mxu0
    %1863 = vmatpush.msra.mxu0 %v1357
    %1864 = vmatpush.msra.mxu0 %v1353
    %1865 = vmatpush.msra.mxu0 %v1349
    %1866 = vmatpush.msra.mxu0 %v1345
    %1867 = vmatpush.msra.mxu0 %v1341
    %1868 = vmatpush.msra.mxu0 %v1337
    %1869 = vmatpush.msra.mxu0 %v1333
    %1870 = vmatpush.msra.mxu0 %v1329
    %1871 = vmatpush.msra.mxu0 %v1325
    %1872 = vmatpush.msra.mxu0 %v1321
    %1873 = vmatpush.msra.mxu0 %v1317
    %1874 = vmatpush.msra.mxu0 %v1313
    %1875 = vmatpush.msra.mxu0 %v1309
    %1876 = vmatpush.msra.mxu0 %v1305
    %1877 = vmatpush.msra.mxu0 %v1301
    %1878 = vmatpush.msra.mxu0 %v1297
    %1879 = vmatmul.f32.gmra.mxu0 %v909
    %v1880 = vpop.f32.mrf.mxu0
    %v1881 = vadd.f32 %v1861, %v1880
    %1882 = vdwg.mxu0
    %1883 = vmatpush.msra.mxu0 %v1421
    %1884 = vmatpush.msra.mxu0 %v1417
    %1885 = vmatpush.msra.mxu0 %v1413
    %1886 = vmatpush.msra.mxu0 %v1409
    %1887 = vmatpush.msra.mxu0 %v1405
    %1888 = vmatpush.msra.mxu0 %v1401
    %1889 = vmatpush.msra.mxu0 %v1397
    %1890 = vmatpush.msra.mxu0 %v1393
    %1891 = vmatpush.msra.mxu0 %v1389
    %1892 = vmatpush.msra.mxu0 %v1385
    %1893 = vmatpush.msra.mxu0 %v1381
    %1894 = vmatpush.msra.mxu0 %v1377
    %1895 = vmatpush.msra.mxu0 %v1373
    %1896 = vmatpush.msra.mxu0 %v1369
    %1897 = vmatpush.msra.mxu0 %v1365
    %1898 = vmatpush.msra.mxu0 %v1361
    %1899 = vmatmul.f32.gmra.mxu0 %v910
    %v1900 = vpop.f32.mrf.mxu0
    %v1901 = vadd.f32 %v1881, %v1900
    %1902 = vdwg.mxu0
    %1903 = vmatpush.msra.mxu0 %v974
    %1904 = vmatpush.msra.mxu0 %v970
    %1905 = vmatpush.msra.mxu0 %v966
    %1906 = vmatpush.msra.mxu0 %v962
    %1907 = vmatpush.msra.mxu0 %v958
    %1908 = vmatpush.msra.mxu0 %v954
    %1909 = vmatpush.msra.mxu0 %v950
    %1910 = vmatpush.msra.mxu0 %v946
    %1911 = vmatpush.msra.mxu0 %v942
    %1912 = vmatpush.msra.mxu0 %v938
    %1913 = vmatpush.msra.mxu0 %v934
    %1914 = vmatpush.msra.mxu0 %v930
    %1915 = vmatpush.msra.mxu0 %v926
    %1916 = vmatpush.msra.mxu0 %v922
    %1917 = vmatpush.msra.mxu0 %v918
    %1918 = vmatpush.msra.mxu0 %v914
    %1919 = vmatmul.f32.gmra.mxu0 %v903
    %v1920 = vpop.f32.mrf.mxu0
    %v1921 = vadd.f32 0.0, %v1920
    %1922 = vdwg.mxu0
    %1923 = vmatpush.msra.mxu0 %v1038
    %1924 = vmatpush.msra.mxu0 %v1034
    %1925 = vmatpush.msra.mxu0 %v1030
    %1926 = vmatpush.msra.mxu0 %v1026
    %1927 = vmatpush.msra.mxu0 %v1022
    %1928 = vmatpush.msra.mxu0 %v1018
    %1929 = vmatpush.msra.mxu0 %v1014
    %1930 = vmatpush.msra.mxu0 %v1010
    %1931 = vmatpush.msra.mxu0 %v1006
    %1932 = vmatpush.msra.mxu0 %v1002
    %1933 = vmatpush.msra.mxu0 %v998
    %1934 = vmatpush.msra.mxu0 %v994
    %1935 = vmatpush.msra.mxu0 %v990
    %1936 = vmatpush.msra.mxu0 %v986
    %1937 = vmatpush.msra.mxu0 %v982
    %1938 = vmatpush.msra.mxu0 %v978
    %1939 = vmatmul.f32.gmra.mxu0 %v904
    %v1940 = vpop.f32.mrf.mxu0
    %v1941 = vadd.f32 %v1921, %v1940
    %1942 = vdwg.mxu0
    %1943 = vmatpush.msra.mxu0 %v1102
    %1944 = vmatpush.msra.mxu0 %v1098
    %1945 = vmatpush.msra.mxu0 %v1094
    %1946 = vmatpush.msra.mxu0 %v1090
    %1947 = vmatpush.msra.mxu0 %v1086
    %1948 = vmatpush.msra.mxu0 %v1082
    %1949 = vmatpush.msra.mxu0 %v1078
    %1950 = vmatpush.msra.mxu0 %v1074
    %1951 = vmatpush.msra.mxu0 %v1070
    %1952 = vmatpush.msra.mxu0 %v1066
    %1953 = vmatpush.msra.mxu0 %v1062
    %1954 = vmatpush.msra.mxu0 %v1058
    %1955 = vmatpush.msra.mxu0 %v1054
    %1956 = vmatpush.msra.mxu0 %v1050
    %1957 = vmatpush.msra.mxu0 %v1046
    %1958 = vmatpush.msra.mxu0 %v1042
    %1959 = vmatmul.f32.gmra.mxu0 %v905
    %v1960 = vpop.f32.mrf.mxu0
    %v1961 = vadd.f32 %v1941, %v1960
    %1962 = vdwg.mxu0
    %1963 = vmatpush.msra.mxu0 %v1166
    %1964 = vmatpush.msra.mxu0 %v1162
    %1965 = vmatpush.msra.mxu0 %v1158
    %1966 = vmatpush.msra.mxu0 %v1154
    %1967 = vmatpush.msra.mxu0 %v1150
    %1968 = vmatpush.msra.mxu0 %v1146
    %1969 = vmatpush.msra.mxu0 %v1142
    %1970 = vmatpush.msra.mxu0 %v1138
    %1971 = vmatpush.msra.mxu0 %v1134
    %1972 = vmatpush.msra.mxu0 %v1130
    %1973 = vmatpush.msra.mxu0 %v1126
    %1974 = vmatpush.msra.mxu0 %v1122
    %1975 = vmatpush.msra.mxu0 %v1118
    %1976 = vmatpush.msra.mxu0 %v1114
    %1977 = vmatpush.msra.mxu0 %v1110
    %1978 = vmatpush.msra.mxu0 %v1106
    %1979 = vmatmul.f32.gmra.mxu0 %v906
    %v1980 = vpop.f32.mrf.mxu0
    %v1981 = vadd.f32 %v1961, %v1980
    %1982 = vdwg.mxu0
    %1983 = vmatpush.msra.mxu0 %v1230
    %1984 = vmatpush.msra.mxu0 %v1226
    %1985 = vmatpush.msra.mxu0 %v1222
    %1986 = vmatpush.msra.mxu0 %v1218
    %1987 = vmatpush.msra.mxu0 %v1214
    %1988 = vmatpush.msra.mxu0 %v1210
    %1989 = vmatpush.msra.mxu0 %v1206
    %1990 = vmatpush.msra.mxu0 %v1202
    %1991 = vmatpush.msra.mxu0 %v1198
    %1992 = vmatpush.msra.mxu0 %v1194
    %1993 = vmatpush.msra.mxu0 %v1190
    %1994 = vmatpush.msra.mxu0 %v1186
    %1995 = vmatpush.msra.mxu0 %v1182
    %1996 = vmatpush.msra.mxu0 %v1178
    %1997 = vmatpush.msra.mxu0 %v1174
    %1998 = vmatpush.msra.mxu0 %v1170
    %1999 = vmatmul.f32.gmra.mxu0 %v907
    %v2000 = vpop.f32.mrf.mxu0
    %v2001 = vadd.f32 %v1981, %v2000
    %2002 = vdwg.mxu0
    %2003 = vmatpush.msra.mxu0 %v1294
    %2004 = vmatpush.msra.mxu0 %v1290
    %2005 = vmatpush.msra.mxu0 %v1286
    %2006 = vmatpush.msra.mxu0 %v1282
    %2007 = vmatpush.msra.mxu0 %v1278
    %2008 = vmatpush.msra.mxu0 %v1274
    %2009 = vmatpush.msra.mxu0 %v1270
    %2010 = vmatpush.msra.mxu0 %v1266
    %2011 = vmatpush.msra.mxu0 %v1262
    %2012 = vmatpush.msra.mxu0 %v1258
    %2013 = vmatpush.msra.mxu0 %v1254
    %2014 = vmatpush.msra.mxu0 %v1250
    %2015 = vmatpush.msra.mxu0 %v1246
    %2016 = vmatpush.msra.mxu0 %v1242
    %2017 = vmatpush.msra.mxu0 %v1238
    %2018 = vmatpush.msra.mxu0 %v1234
    %2019 = vmatmul.f32.gmra.mxu0 %v908
    %v2020 = vpop.f32.mrf.mxu0
    %v2021 = vadd.f32 %v2001, %v2020
    %2022 = vdwg.mxu0
    %2023 = vmatpush.msra.mxu0 %v1358
    %2024 = vmatpush.msra.mxu0 %v1354
    %2025 = vmatpush.msra.mxu0 %v1350
    %2026 = vmatpush.msra.mxu0 %v1346
    %2027 = vmatpush.msra.mxu0 %v1342
    %2028 = vmatpush.msra.mxu0 %v1338
    %2029 = vmatpush.msra.mxu0 %v1334
    %2030 = vmatpush.msra.mxu0 %v1330
    %2031 = vmatpush.msra.mxu0 %v1326
    %2032 = vmatpush.msra.mxu0 %v1322
    %2033 = vmatpush.msra.mxu0 %v1318
    %2034 = vmatpush.msra.mxu0 %v1314
    %2035 = vmatpush.msra.mxu0 %v1310
    %2036 = vmatpush.msra.mxu0 %v1306
    %2037 = vmatpush.msra.mxu0 %v1302
    %2038 = vmatpush.msra.mxu0 %v1298
    %2039 = vmatmul.f32.gmra.mxu0 %v909
    %v2040 = vpop.f32.mrf.mxu0
    %v2041 = vadd.f32 %v2021, %v2040
    %2042 = vdwg.mxu0
    %2043 = vmatpush.msra.mxu0 %v1422
    %2044 = vmatpush.msra.mxu0 %v1418
    %2045 = vmatpush.msra.mxu0 %v1414
    %2046 = vmatpush.msra.mxu0 %v1410
    %2047 = vmatpush.msra.mxu0 %v1406
    %2048 = vmatpush.msra.mxu0 %v1402
    %2049 = vmatpush.msra.mxu0 %v1398
    %2050 = vmatpush.msra.mxu0 %v1394
    %2051 = vmatpush.msra.mxu0 %v1390
    %2052 = vmatpush.msra.mxu0 %v1386
    %2053 = vmatpush.msra.mxu0 %v1382
    %2054 = vmatpush.msra.mxu0 %v1378
    %2055 = vmatpush.msra.mxu0 %v1374
    %2056 = vmatpush.msra.mxu0 %v1370
    %2057 = vmatpush.msra.mxu0 %v1366
    %2058 = vmatpush.msra.mxu0 %v1362
    %2059 = vmatmul.f32.gmra.mxu0 %v910
    %v2060 = vpop.f32.mrf.mxu0
    %v2061 = vadd.f32 %v2041, %v2060
    %2062 = vdwg.mxu0
    %v2063 = vld [vmem:[#allocation11] sm:$0xf]
    %v2064 = vld [vmem:[#allocation13] sm:$0xf]
    %v2065 = vrot.slane %v1581, 4
    %v2066 = vadd.f32 %v1581, %v2065
    %v2067 = vrot.slane %v2066, 2
    %v2068 = vadd.f32 %v2066, %v2067
    %v2069 = vrot.slane %v2068, 1
    %v2070 = vadd.f32 %v2068, %v2069
    %v2071 = vrot.slane %v1741, 4
    %v2072 = vadd.f32 %v1741, %v2071
    %v2073 = vrot.slane %v2072, 2
    %v2074 = vadd.f32 %v2072, %v2073
    %v2075 = vrot.slane %v2074, 1
    %v2076 = vadd.f32 %v2074, %v2075
    %v2077 = vrot.slane %v1901, 4
    %v2078 = vadd.f32 %v1901, %v2077
    %v2079 = vrot.slane %v2078, 2
    %v2080 = vadd.f32 %v2078, %v2079
    %v2081 = vrot.slane %v2080, 1
    %v2082 = vadd.f32 %v2080, %v2081
    %v2083 = vrot.slane %v2061, 4
    %v2084 = vadd.f32 %v2061, %v2083
    %v2085 = vrot.slane %v2084, 2
    %v2086 = vadd.f32 %v2084, %v2085
    %v2087 = vrot.slane %v2086, 1
    %v2088 = vadd.f32 %v2086, %v2087
    %v2089 = vmul.f32 %v2070, 0.125
    %v2090 = vmul.f32 %v2076, 0.125
    %v2091 = vmul.f32 %v2082, 0.125
    %v2092 = vmul.f32 %v2088, 0.125
    %v2093 = vsub.f32 %v1581, %v2089
    %v2094 = vsub.f32 %v1741, %v2090
    %v2095 = vsub.f32 %v1901, %v2091
    %v2096 = vsub.f32 %v2061, %v2092
    %v2097 = vmul.f32 %v2093, %v2093
    %v2098 = vmul.f32 %v2094, %v2094
    %v2099 = vmul.f32 %v2095, %v2095
    %v2100 = vmul.f32 %v2096, %v2096
    %v2101 = vrot.slane %v2097, 4
    %v2102 = vadd.f32 %v2097, %v2101
    %v2103 = vrot.slane %v2102, 2
    %v2104 = vadd.f32 %v2102, %v2103
    %v2105 = vrot.slane %v2104, 1
    %v2106 = vadd.f32 %v2104, %v2105
    %v2107 = vrot.slane %v2098, 4
    %v2108 = vadd.f32 %v2098, %v2107
    %v2109 = vrot.slane %v2108, 2
    %v2110 = vadd.f32 %v2108, %v2109
    %v2111 = vrot.slane %v2110, 1
    %v2112 = vadd.f32 %v2110, %v2111
    %v2113 = vrot.slane %v2099, 4
    %v2114 = vadd.f32 %v2099, %v2113
    %v2115 = vrot.slane %v2114, 2
    %v2116 = vadd.f32 %v2114, %v2115
    %v2117 = vrot.slane %v2116, 1
    %v2118 = vadd.f32 %v2116, %v2117
    %v2119 = vrot.slane %v2100, 4
    %v2120 = vadd.f32 %v2100, %v2119
    %v2121 = vrot.slane %v2120, 2
    %v2122 = vadd.f32 %v2120, %v2121
    %v2123 = vrot.slane %v2122, 1
    %v2124 = vadd.f32 %v2122, %v2123
    %v2125 = vmul.f32 %v2106, 0.125
    %v2126 = vmul.f32 %v2112, 0.125
    %v2127 = vmul.f32 %v2118, 0.125
    %v2128 = vmul.f32 %v2124, 0.125
    %v2129 = vadd.f32 %v2125, 1e-05
    %v2130 = vadd.f32 %v2126, 1e-05
    %v2131 = vadd.f32 %v2127, 1e-05
    %v2132 = vadd.f32 %v2128, 1e-05
    %v2133 = vrsqrt.pop %v2129
    %v2134 = vmul.f32 %v2133, %v2129
    %v2135 = vmul.f32 %v2134, %v2133
    %v2136 = vmul.f32 0.5, %v2135
    %v2137 = vsub.f32 1.5, %v2136
    %v2138 = vmul.f32 %v2133, %v2137
    %v2139 = vmul.f32 %v2129, %v2138
    %vm2140 = vcmp.eq.f32.partialorder %v2129, inf
    %v2141 = vsel %vm2140, %v2129, %v2139
    %vm2142 = vcmp.eq.f32.partialorder %v2129, 0.0
    %v2143 = vand.u32 %v2129, 2147483648
    %v2144 = vsel %vm2142, %v2143, %v2141
    %v2145 = vrsqrt.pop %v2130
    %v2146 = vmul.f32 %v2145, %v2130
    %v2147 = vmul.f32 %v2146, %v2145
    %v2148 = vmul.f32 0.5, %v2147
    %v2149 = vsub.f32 1.5, %v2148
    %v2150 = vmul.f32 %v2145, %v2149
    %v2151 = vmul.f32 %v2130, %v2150
    %vm2152 = vcmp.eq.f32.partialorder %v2130, inf
    %v2153 = vsel %vm2152, %v2130, %v2151
    %vm2154 = vcmp.eq.f32.partialorder %v2130, 0.0
    %v2155 = vand.u32 %v2130, 2147483648
    %v2156 = vsel %vm2154, %v2155, %v2153
    %v2157 = vrsqrt.pop %v2131
    %v2158 = vmul.f32 %v2157, %v2131
    %v2159 = vmul.f32 %v2158, %v2157
    %v2160 = vmul.f32 0.5, %v2159
    %v2161 = vsub.f32 1.5, %v2160
    %v2162 = vmul.f32 %v2157, %v2161
    %v2163 = vmul.f32 %v2131, %v2162
    %vm2164 = vcmp.eq.f32.partialorder %v2131, inf
    %v2165 = vsel %vm2164, %v2131, %v2163
    %vm2166 = vcmp.eq.f32.partialorder %v2131, 0.0
    %v2167 = vand.u32 %v2131, 2147483648
    %v2168 = vsel %vm2166, %v2167, %v2165
    %v2169 = vrsqrt.pop %v2132
    %v2170 = vmul.f32 %v2169, %v2132
    %v2171 = vmul.f32 %v2170, %v2169
    %v2172 = vmul.f32 0.5, %v2171
    %v2173 = vsub.f32 1.5, %v2172
    %v2174 = vmul.f32 %v2169, %v2173
    %v2175 = vmul.f32 %v2132, %v2174
    %vm2176 = vcmp.eq.f32.partialorder %v2132, inf
    %v2177 = vsel %vm2176, %v2132, %v2175
    %vm2178 = vcmp.eq.f32.partialorder %v2132, 0.0
    %v2179 = vand.u32 %v2132, 2147483648
    %v2180 = vsel %vm2178, %v2179, %v2177
    %v2185 = vrot.slane %v2156, 7
    %v2186 = vrot.slane %v2168, 6
    %v2187 = vrot.slane %v2180, 5
    %v2188 = vsel %vm639, %v2144, %v2185
    %v2189 = vsel %vm641, %v2186, %v2187
    %v2190 = vsel %vm643, %v2188, %v2189
    %v2192 = vrcp.pop %v2190
    %v2193 = vmul.f32 %v2190, %v2192
    %v2194 = vsub.f32 1.0, %v2193
    %v2195 = vmul.f32 %v2192, %v2194
    %v2196 = vadd.f32 %v2192, %v2195
    %vm2197 = vweird.f32 %v2190
    %vm2198 = vweird.f32 %v2192
    %vm2199 = vmor %vm2197, %vm2198
    %v2200 = vsel %vm2199, %v2192, %v2196
    %v2201 = vand.u32 2147483647, %v2190
    %vm2202 = vcmp.eq.f32.partialorder %v2201, 8.507059e+37
    %v2203 = vand.u32 %v2190, 2147483648
    %v2204 = vor.u32 1.1754944e-38, %v2203
    %v2205 = vsel %vm2202, %v2204, %v2200
    %v2206 = vmul.f32 %v2063, %v2205
    %v2208 = vperm.slane %v2206, 0
    %v2209 = vperm.slane %v2206, 1
    %v2210 = vperm.slane %v2206, 2
    %v2211 = vperm.slane %v2206, 3
    %v2216 = vmul.f32 %v2093, %v2208
    %v2217 = vmul.f32 %v2094, %v2209
    %v2218 = vmul.f32 %v2095, %v2210
    %v2219 = vmul.f32 %v2096, %v2211
    %v2221 = vperm.slane %v2064, 0
    %v2222 = vperm.slane %v2064, 1
    %v2223 = vperm.slane %v2064, 2
    %v2224 = vperm.slane %v2064, 3
    %v2229 = vadd.f32 %v2216, %v2221
    %v2230 = vadd.f32 %v2217, %v2222
    %v2231 = vadd.f32 %v2218, %v2223
    %v2232 = vadd.f32 %v2219, %v2224
    %v2233 = vmin.f32 %v2229, 20.0
    %v2234 = vmin.f32 %v2230, 20.0
    %v2235 = vmin.f32 %v2231, 20.0
    %v2236 = vmin.f32 %v2232, 20.0
    %v2237 = vmul.f32 %v2233, 1.442695
    %v2238 = vpow.pop %v2237
    %v2239 = vmul.f32 %v2234, 1.442695
    %v2240 = vpow.pop %v2239
    %v2241 = vmul.f32 %v2235, 1.442695
    %v2242 = vpow.pop %v2241
    %v2243 = vmul.f32 %v2236, 1.442695
    %v2244 = vpow.pop %v2243
    %v2245 = vadd.f32 %v2238, 2.0
    %v2246 = vadd.f32 %v2240, 2.0
    %v2247 = vadd.f32 %v2242, 2.0
    %v2248 = vadd.f32 %v2244, 2.0
    %v2249 = vmul.f32 %v2238, %v2245
    %v2250 = vmul.f32 %v2240, %v2246
    %v2251 = vmul.f32 %v2242, %v2247
    %v2252 = vmul.f32 %v2244, %v2248
    %v2253 = vadd.f32 %v2249, 2.0
    %v2254 = vadd.f32 %v2250, 2.0
    %v2255 = vadd.f32 %v2251, 2.0
    %v2256 = vadd.f32 %v2252, 2.0
    %v2257 = vrcp.pop %v2253
    %v2258 = vmul.f32 %v2253, %v2257
    %v2259 = vsub.f32 1.0, %v2258
    %v2260 = vmul.f32 %v2257, %v2259
    %v2261 = vadd.f32 %v2257, %v2260
    %vm2262 = vweird.f32 %v2253
    %vm2263 = vweird.f32 %v2257
    %vm2264 = vmor %vm2262, %vm2263
    %v2265 = vsel %vm2264, %v2257, %v2261
    %v2266 = vand.u32 2147483647, %v2253
    %vm2267 = vcmp.eq.f32.partialorder %v2266, 8.507059e+37
    %v2268 = vand.u32 %v2253, 2147483648
    %v2269 = vor.u32 1.1754944e-38, %v2268
    %v2270 = vsel %vm2267, %v2269, %v2265
    %v2271 = vmul.f32 %v2249, %v2270
    %v2272 = vrcp.pop %v2254
    %v2273 = vmul.f32 %v2254, %v2272
    %v2274 = vsub.f32 1.0, %v2273
    %v2275 = vmul.f32 %v2272, %v2274
    %v2276 = vadd.f32 %v2272, %v2275
    %vm2277 = vweird.f32 %v2254
    %vm2278 = vweird.f32 %v2272
    %vm2279 = vmor %vm2277, %vm2278
    %v2280 = vsel %vm2279, %v2272, %v2276
    %v2281 = vand.u32 2147483647, %v2254
    %vm2282 = vcmp.eq.f32.partialorder %v2281, 8.507059e+37
    %v2283 = vand.u32 %v2254, 2147483648
    %v2284 = vor.u32 1.1754944e-38, %v2283
    %v2285 = vsel %vm2282, %v2284, %v2280
    %v2286 = vmul.f32 %v2250, %v2285
    %v2287 = vrcp.pop %v2255
    %v2288 = vmul.f32 %v2255, %v2287
    %v2289 = vsub.f32 1.0, %v2288
    %v2290 = vmul.f32 %v2287, %v2289
    %v2291 = vadd.f32 %v2287, %v2290
    %vm2292 = vweird.f32 %v2255
    %vm2293 = vweird.f32 %v2287
    %vm2294 = vmor %vm2292, %vm2293
    %v2295 = vsel %vm2294, %v2287, %v2291
    %v2296 = vand.u32 2147483647, %v2255
    %vm2297 = vcmp.eq.f32.partialorder %v2296, 8.507059e+37
    %v2298 = vand.u32 %v2255, 2147483648
    %v2299 = vor.u32 1.1754944e-38, %v2298
    %v2300 = vsel %vm2297, %v2299, %v2295
    %v2301 = vmul.f32 %v2251, %v2300
    %v2302 = vrcp.pop %v2256
    %v2303 = vmul.f32 %v2256, %v2302
    %v2304 = vsub.f32 1.0, %v2303
    %v2305 = vmul.f32 %v2302, %v2304
    %v2306 = vadd.f32 %v2302, %v2305
    %vm2307 = vweird.f32 %v2256
    %vm2308 = vweird.f32 %v2302
    %vm2309 = vmor %vm2307, %vm2308
    %v2310 = vsel %vm2309, %v2302, %v2306
    %v2311 = vand.u32 2147483647, %v2256
    %vm2312 = vcmp.eq.f32.partialorder %v2311, 8.507059e+37
    %v2313 = vand.u32 %v2256, 2147483648
    %v2314 = vor.u32 1.1754944e-38, %v2313
    %v2315 = vsel %vm2312, %v2314, %v2310
    %v2316 = vmul.f32 %v2252, %v2315
    %vm2317 = vcmp.gt.f32.partialorder %v2229, 20.0
    %vm2318 = vcmp.gt.f32.partialorder %v2230, 20.0
    %vm2319 = vcmp.gt.f32.partialorder %v2231, 20.0
    %vm2320 = vcmp.gt.f32.partialorder %v2232, 20.0
    %v2321 = vmul.f32 %v2229, %v2271
    %v2322 = vmul.f32 %v2230, %v2286
    %v2323 = vmul.f32 %v2231, %v2301
    %v2324 = vmul.f32 %v2232, %v2316
    %v2325 = vsel %vm2317, %v2229, %v2321
    %v2326 = vsel %vm2318, %v2230, %v2322
    %v2327 = vsel %vm2319, %v2231, %v2323
    %v2328 = vsel %vm2320, %v2232, %v2324
    %v2329 = vld [vmem:[#allocation14] sm:$0xff]
    %v2330 = vld [vmem:[#allocation14 + $0x8] sm:$0xff]
    %v2331 = vld [vmem:[#allocation14 + $0x10] sm:$0xff]
    %v2332 = vld [vmem:[#allocation14 + $0x18] sm:$0xff]
    %v2333 = vld [vmem:[#allocation14 + $0x20] sm:$0xff]
    %v2334 = vld [vmem:[#allocation14 + $0x28] sm:$0xff]
    %v2335 = vld [vmem:[#allocation14 + $0x30] sm:$0xff]
    %v2336 = vld [vmem:[#allocation14 + $0x38] sm:$0xff]
    %v2337 = vld [vmem:[#allocation14 + $0x40] sm:$0xff]
    %v2338 = vld [vmem:[#allocation14 + $0x48] sm:$0xff]
    %v2339 = vld [vmem:[#allocation14 + $0x50] sm:$0xff]
    %v2340 = vld [vmem:[#allocation14 + $0x58] sm:$0xff]
    %v2341 = vld [vmem:[#allocation14 + $0x60] sm:$0xff]
    %v2342 = vld [vmem:[#allocation14 + $0x68] sm:$0xff]
    %v2343 = vld [vmem:[#allocation14 + $0x70] sm:$0xff]
    %v2344 = vld [vmem:[#allocation14 + $0x78] sm:$0xff]
    %v2345 = vld [vmem:[#allocation14 + $0x80] sm:$0xff]
    %v2346 = vld [vmem:[#allocation14 + $0x88] sm:$0xff]
    %v2347 = vld [vmem:[#allocation14 + $0x90] sm:$0xff]
    %v2348 = vld [vmem:[#allocation14 + $0x98] sm:$0xff]
    %v2349 = vld [vmem:[#allocation14 + $0xa0] sm:$0xff]
    %v2350 = vld [vmem:[#allocation14 + $0xa8] sm:$0xff]
    %v2351 = vld [vmem:[#allocation14 + $0xb0] sm:$0xff]
    %v2352 = vld [vmem:[#allocation14 + $0xb8] sm:$0xff]
    %v2353 = vld [vmem:[#allocation14 + $0xc0] sm:$0xff]
    %v2354 = vld [vmem:[#allocation14 + $0xc8] sm:$0xff]
    %v2355 = vld [vmem:[#allocation14 + $0xd0] sm:$0xff]
    %v2356 = vld [vmem:[#allocation14 + $0xd8] sm:$0xff]
    %v2357 = vld [vmem:[#allocation14 + $0xe0] sm:$0xff]
    %v2358 = vld [vmem:[#allocation14 + $0xe8] sm:$0xff]
    %v2359 = vld [vmem:[#allocation14 + $0xf0] sm:$0xff]
    %v2360 = vld [vmem:[#allocation14 + $0xf8] sm:$0xff]
    %v2361 = vld [vmem:[#allocation14 + $0x100] sm:$0xff]
    %v2362 = vld [vmem:[#allocation14 + $0x108] sm:$0xff]
    %v2363 = vld [vmem:[#allocation14 + $0x110] sm:$0xff]
    %v2364 = vld [vmem:[#allocation14 + $0x118] sm:$0xff]
    %v2365 = vld [vmem:[#allocation14 + $0x120] sm:$0xff]
    %v2366 = vld [vmem:[#allocation14 + $0x128] sm:$0xff]
    %v2367 = vld [vmem:[#allocation14 + $0x130] sm:$0xff]
    %v2368 = vld [vmem:[#allocation14 + $0x138] sm:$0xff]
    %v2369 = vld [vmem:[#allocation14 + $0x140] sm:$0xff]
    %v2370 = vld [vmem:[#allocation14 + $0x148] sm:$0xff]
    %v2371 = vld [vmem:[#allocation14 + $0x150] sm:$0xff]
    %v2372 = vld [vmem:[#allocation14 + $0x158] sm:$0xff]
    %v2373 = vld [vmem:[#allocation14 + $0x160] sm:$0xff]
    %v2374 = vld [vmem:[#allocation14 + $0x168] sm:$0xff]
    %v2375 = vld [vmem:[#allocation14 + $0x170] sm:$0xff]
    %v2376 = vld [vmem:[#allocation14 + $0x178] sm:$0xff]
    %v2377 = vld [vmem:[#allocation14 + $0x180] sm:$0xff]
    %v2378 = vld [vmem:[#allocation14 + $0x188] sm:$0xff]
    %v2379 = vld [vmem:[#allocation14 + $0x190] sm:$0xff]
    %v2380 = vld [vmem:[#allocation14 + $0x198] sm:$0xff]
    %v2381 = vld [vmem:[#allocation14 + $0x1a0] sm:$0xff]
    %v2382 = vld [vmem:[#allocation14 + $0x1a8] sm:$0xff]
    %v2383 = vld [vmem:[#allocation14 + $0x1b0] sm:$0xff]
    %v2384 = vld [vmem:[#allocation14 + $0x1b8] sm:$0xff]
    %v2385 = vld [vmem:[#allocation14 + $0x1c0] sm:$0xff]
    %v2386 = vld [vmem:[#allocation14 + $0x1c8] sm:$0xff]
    %v2387 = vld [vmem:[#allocation14 + $0x1d0] sm:$0xff]
    %v2388 = vld [vmem:[#allocation14 + $0x1d8] sm:$0xff]
    %v2389 = vld [vmem:[#allocation14 + $0x1e0] sm:$0xff]
    %v2390 = vld [vmem:[#allocation14 + $0x1e8] sm:$0xff]
    %v2391 = vld [vmem:[#allocation14 + $0x1f0] sm:$0xff]
    %v2392 = vld [vmem:[#allocation14 + $0x1f8] sm:$0xff]
    %v2393 = vld [vmem:[#allocation16] sm:$0x1]
    %v2395 = vperm.slane %v2393, 0
    %2397 = vmatpush.msra.mxu0 %v2344
    %2398 = vmatpush.msra.mxu0 %v2343
    %2399 = vmatpush.msra.mxu0 %v2342
    %2400 = vmatpush.msra.mxu0 %v2341
    %2401 = vmatpush.msra.mxu0 %v2340
    %2402 = vmatpush.msra.mxu0 %v2339
    %2403 = vmatpush.msra.mxu0 %v2338
    %2404 = vmatpush.msra.mxu0 %v2337
    %2405 = vmatpush.msra.mxu0 %v2336
    %2406 = vmatpush.msra.mxu0 %v2335
    %2407 = vmatpush.msra.mxu0 %v2334
    %2408 = vmatpush.msra.mxu0 %v2333
    %2409 = vmatpush.msra.mxu0 %v2332
    %2410 = vmatpush.msra.mxu0 %v2331
    %2411 = vmatpush.msra.mxu0 %v2330
    %2412 = vmatpush.msra.mxu0 %v2329
    %2413 = vmatmul.f32.gmra.mxu0 %v2325
    %v2414 = vpop.f32.mrf.mxu0
    %v2415 = vadd.f32 %v2395, %v2414
    %2416 = vdwg.mxu0
    %2417 = vmatpush.msra.mxu0 %v2360
    %2418 = vmatpush.msra.mxu0 %v2359
    %2419 = vmatpush.msra.mxu0 %v2358
    %2420 = vmatpush.msra.mxu0 %v2357
    %2421 = vmatpush.msra.mxu0 %v2356
    %2422 = vmatpush.msra.mxu0 %v2355
    %2423 = vmatpush.msra.mxu0 %v2354
    %2424 = vmatpush.msra.mxu0 %v2353
    %2425 = vmatpush.msra.mxu0 %v2352
    %2426 = vmatpush.msra.mxu0 %v2351
    %2427 = vmatpush.msra.mxu0 %v2350
    %2428 = vmatpush.msra.mxu0 %v2349
    %2429 = vmatpush.msra.mxu0 %v2348
    %2430 = vmatpush.msra.mxu0 %v2347
    %2431 = vmatpush.msra.mxu0 %v2346
    %2432 = vmatpush.msra.mxu0 %v2345
    %2433 = vmatmul.f32.gmra.mxu0 %v2326
    %v2434 = vpop.f32.mrf.mxu0
    %v2435 = vadd.f32 %v2415, %v2434
    %2436 = vdwg.mxu0
    %2437 = vmatpush.msra.mxu0 %v2376
    %2438 = vmatpush.msra.mxu0 %v2375
    %2439 = vmatpush.msra.mxu0 %v2374
    %2440 = vmatpush.msra.mxu0 %v2373
    %2441 = vmatpush.msra.mxu0 %v2372
    %2442 = vmatpush.msra.mxu0 %v2371
    %2443 = vmatpush.msra.mxu0 %v2370
    %2444 = vmatpush.msra.mxu0 %v2369
    %2445 = vmatpush.msra.mxu0 %v2368
    %2446 = vmatpush.msra.mxu0 %v2367
    %2447 = vmatpush.msra.mxu0 %v2366
    %2448 = vmatpush.msra.mxu0 %v2365
    %2449 = vmatpush.msra.mxu0 %v2364
    %2450 = vmatpush.msra.mxu0 %v2363
    %2451 = vmatpush.msra.mxu0 %v2362
    %2452 = vmatpush.msra.mxu0 %v2361
    %2453 = vmatmul.f32.gmra.mxu0 %v2327
    %v2454 = vpop.f32.mrf.mxu0
    %v2455 = vadd.f32 %v2435, %v2454
    %2456 = vdwg.mxu0
    %2457 = vmatpush.msra.mxu0 %v2392
    %2458 = vmatpush.msra.mxu0 %v2391
    %2459 = vmatpush.msra.mxu0 %v2390
    %2460 = vmatpush.msra.mxu0 %v2389
    %2461 = vmatpush.msra.mxu0 %v2388
    %2462 = vmatpush.msra.mxu0 %v2387
    %2463 = vmatpush.msra.mxu0 %v2386
    %2464 = vmatpush.msra.mxu0 %v2385
    %2465 = vmatpush.msra.mxu0 %v2384
    %2466 = vmatpush.msra.mxu0 %v2383
    %2467 = vmatpush.msra.mxu0 %v2382
    %2468 = vmatpush.msra.mxu0 %v2381
    %2469 = vmatpush.msra.mxu0 %v2380
    %2470 = vmatpush.msra.mxu0 %v2379
    %2471 = vmatpush.msra.mxu0 %v2378
    %2472 = vmatpush.msra.mxu0 %v2377
    %2473 = vmatmul.f32.gmra.mxu0 %v2328
    %v2474 = vpop.f32.mrf.mxu0
    %v2475 = vadd.f32 %v2455, %v2474
    %2476 = vdwg.mxu0
    %2477 = vst [vmem:[#allocation17] sm:$0xff] %v2475
    // Predicated region
    $region74: #{encoder_forward.1} parent=1 // pred_check
      _
    $region75: #{encoder_forward.1} parent=1 // pred_check_branch
      %2479 = sbr.rel (0) target = $region77
    $region76: #{encoder_forward.1} parent=1 // pred_region
      %2481 = vsyncadd [#allocation4], 0
      %s2483 = sshll.u32 [#allocation17], 4
      %s2484 = int_to_ptr.vmem [resolvable:$true] %s2483
      %s2485 = sshll.u32 %s9, 4
      %s2486 = int_to_ptr.hbm [resolvable:$true] %s2485
      %2488 = dma.vmem_to_hbm [thread:$0]  %s2484, 128, %s2486, [#allocation4]
    $region77: #{encoder_forward.1} parent=1 // pred_fallthru
      _
    // Predicated region
    $region78: #{encoder_forward.1} parent=1 // pred_check
      _
    $region79: #{encoder_forward.1} parent=1 // pred_check_branch
      %2490 = sbr.rel (0) target = $region81
    $region80: #{encoder_forward.1} parent=1 // pred_region
      %2492 = dma.done [#allocation4], 128
    $region81: #{encoder_forward.1} parent=1 // pred_fallthru
      _
    %2493 = vsyncpa [#allocation3], 1
    %2494 = vsyncpa [#allocation6], 1
    %2495 = vsyncpa [#allocation9], 1
    %2496 = vsyncpa [#allocation12], 1
    %2497 = vsyncpa [#allocation15], 1
    %2498 = vsyncpa [#allocation4], 1

</llo_original>
